<compile_context>
chip_gen: v7x
topology: tpu7x:2x2x1
jax: 0.10.0
libtpu: 0.0.40
codegen_flags: <defaults>
</compile_context>

<pallas_src>
import functools
import math

import numpy as np
import jax
import jax.numpy as jnp
from jax.experimental import pallas as pl
from jax.experimental.pallas import tpu as pltpu


# PyTorch bicubic (a=-0.75) tap weights for scale_factor=2, align_corners=False.
_BW = (-0.03515625, 0.26171875, 0.87890625, -0.10546875)


def _bicubic_x2_matrix(n):
    """(2n, n) matrix implementing PyTorch's 1-D bicubic x2 upsample."""
    U = np.zeros((2 * n, n), np.float64)
    for i in range(n):
        for k, off in enumerate((-2, -1, 0, 1)):      # even output row 2i
            U[2 * i, min(max(i + off, 0), n - 1)] += _BW[k]
        for k, off in enumerate((-1, 0, 1, 2)):       # odd output row 2i+1
            U[2 * i + 1, min(max(i + off, 0), n - 1)] += _BW[3 - k]
    return U


def _sin_pos_grid2d_nchw(h, w, out_dim):
    """SinusoidalPositionalEmbedding(out_dim//2).make_grid2d(h, w), flattened
    to the NCHW layout: (out_dim, h*w)."""
    emb_dim = out_dim // 2
    half = emb_dim // 2
    max_pos = max(h, w) + 1
    scale = math.log(10000.0) / (half - 1)
    freq = np.exp(np.arange(half, dtype=np.float64) * (-scale))
    pos = np.arange(max_pos, dtype=np.float64)
    ang = pos[:, None] * freq[None, :]
    table = np.concatenate([np.sin(ang), np.cos(ang)], axis=1)
    if emb_dim % 2 == 1:
        table = np.concatenate([table, np.zeros((max_pos, 1))], axis=1)
    table[0] = 0.0                                     # padding_idx = 0
    x_emb = table[1:w + 1]                             # (w, emb_dim)
    y_emb = table[1:h + 1]                             # (h, emb_dim)
    x_grid = np.broadcast_to(x_emb[None, :, :], (h, w, emb_dim))
    y_grid = np.broadcast_to(y_emb[:, None, :], (h, w, emb_dim))
    grid = np.concatenate([x_grid, y_grid], axis=-1)   # (h, w, out_dim)
    grid = np.ascontiguousarray(grid.transpose(2, 0, 1)).reshape(out_dim, h * w)
    return jnp.asarray(grid.astype(np.float32))


# ------------------------------ Pallas kernel -------------------------------

def _upsample_ln_linear_kernel(x_ref, m_ref, g_ref, b_ref, w_ref, wb_ref,
                               pe_ref, alpha_ref, o_ref, *, eps):
    # x_ref block: (1, C, N) channel-major tokens for one batch element.
    x = x_ref[0]                                                      # (C, N)
    # Bicubic x2 along both axes as one MXU matmul against kron(U_H, U_W)^T.
    up = jnp.dot(x, m_ref[...], preferred_element_type=jnp.float32)   # (C, 4N)
    # LayerNorm over channels (= sublane axis in this layout), biased variance.
    mu = jnp.mean(up, axis=0, keepdims=True)                          # (1, 4N)
    xc = up - mu
    var = jnp.mean(xc * xc, axis=0, keepdims=True)
    normed = xc * jax.lax.rsqrt(var + eps)
    normed = normed * g_ref[...] + b_ref[...]                         # (C,1) bcast
    # Reduction Linear: (out_dim, C) @ (C, 4N) -> lane-dense (out_dim, 4N).
    y = jnp.dot(w_ref[...], normed, preferred_element_type=jnp.float32)
    y = y + wb_ref[...]                                               # (out_dim,1)
    # + alpha * sinusoidal positional grid (already NCHW-flattened).
    y = y + alpha_ref[0, 0] * pe_ref[...]
    o_ref[0] = y


def bilinear_upsample_forward(params, x, *, in_res, eps=1e-5):
    BS, N, C = x.shape
    H = W = in_res
    assert N == H * W
    out_dim, _ = params["red_w"].shape
    N4 = 4 * N

    # Mirrors the module's `x.permute(0, 2, 1).contiguous()` (tiny transpose).
    x_cn = jnp.transpose(x, (0, 2, 1))                                # (BS, C, N)

    out = pl.pallas_call(
        functools.partial(_upsample_ln_linear_kernel, eps=eps),
        out_shape=jax.ShapeDtypeStruct((BS, out_dim, N4), jnp.float32),
        grid=(BS,),
        in_specs=[
            pl.BlockSpec((1, C, N), lambda b: (b, 0, 0)),             # x (NCHW flat)
            pl.BlockSpec((N, N4), lambda b: (0, 0)),                  # kron(U,U)^T
            pl.BlockSpec((C, 1), lambda b: (0, 0)),                   # LN gamma
            pl.BlockSpec((C, 1), lambda b: (0, 0)),                   # LN beta
            pl.BlockSpec((out_dim, C), lambda b: (0, 0)),             # Linear weight
            pl.BlockSpec((out_dim, 1), lambda b: (0, 0)),             # Linear bias
            pl.BlockSpec((out_dim, N4), lambda b: (0, 0)),            # sin-pos grid
            pl.BlockSpec(memory_space=pltpu.MemorySpace.SMEM),        # alpha (1,1)
        ],
        out_specs=pl.BlockSpec((1, out_dim, N4), lambda b: (b, 0, 0)),
        compiler_params=pltpu.CompilerParams(
            dimension_semantics=("parallel",)),
    )(x_cn, params["Mt"], params["ln_g"].reshape(C, 1),
      params["ln_b"].reshape(C, 1), params["red_w"],
      params["red_b"].reshape(out_dim, 1), params["pe"], params["alpha"])

    # torch: x.reshape(BS, 2H*2W, -1) on the contiguous NCHW tensor — a raw
    # row-major reinterpretation; this reshape reproduces it exactly (free).
    return out.reshape(BS, N4, out_dim)


def init_bilinear_upsample(key, *, in_res, dim, out_dim):
    k_w, k_b = jax.random.split(key)
    H = W = in_res
    Mt = np.kron(_bicubic_x2_matrix(H), _bicubic_x2_matrix(W)).T      # (N, 4N)
    return dict(
        ln_g=jnp.ones((dim,), jnp.float32),
        ln_b=jnp.zeros((dim,), jnp.float32),
        red_w=jax.random.normal(k_w, (out_dim, dim), jnp.float32) * 0.02,
        red_b=jax.random.normal(k_b, (out_dim,), jnp.float32) * 0.02,
        # The module initializes alpha to 0; use a nonzero value here so the
        # fused positional-embedding path is exercised numerically.
        alpha=jnp.full((1, 1), 0.25, jnp.float32),
        Mt=jnp.asarray(Mt.astype(np.float32)),
        pe=_sin_pos_grid2d_nchw(2 * H, 2 * W, out_dim),
    )


# --------------------------- plain-JAX reference ----------------------------

def _bicubic_up_axis_ref(x, axis):
    n = x.shape[axis]
    idx = jnp.arange(n)

    def tap(off):
        return jnp.take(x, jnp.clip(idx + off, 0, n - 1), axis=axis)

    even = _BW[0] * tap(-2) + _BW[1] * tap(-1) + _BW[2] * tap(0) + _BW[3] * tap(1)
    odd = _BW[3] * tap(-1) + _BW[2] * tap(0) + _BW[1] * tap(1) + _BW[0] * tap(2)
    out = jnp.stack([even, odd], axis=axis + 1)
    shp = list(x.shape)
    shp[axis] = 2 * n
    return out.reshape(shp)


def reference_forward(params, x, *, in_res, eps=1e-5):
    """Plain-JAX replica of the PyTorch module (independent bicubic path)."""
    BS, N, C = x.shape
    H = W = in_res
    out_dim, _ = params["red_w"].shape
    xi = jnp.transpose(x, (0, 2, 1)).reshape(BS, C, H, W)
    xi = _bicubic_up_axis_ref(_bicubic_up_axis_ref(xi, 2), 3)         # (BS,C,2H,2W)
    xt = jnp.transpose(xi.reshape(BS, C, 4 * N), (0, 2, 1))           # (BS,4N,C)
    mu = xt.mean(-1, keepdims=True)
    var = ((xt - mu) ** 2).mean(-1, keepdims=True)
    xn = (xt - mu) * jax.lax.rsqrt(var + eps) * params["ln_g"] + params["ln_b"]
    y = jnp.einsum("bnc,oc->bno", xn, params["red_w"],
                   precision=jax.lax.Precision.HIGHEST) + params["red_b"]
    y = jnp.transpose(y, (0, 2, 1)).reshape(BS, out_dim, 2 * H, 2 * W)
    pe = params["pe"].reshape(out_dim, 2 * H, 2 * W)
    y = y + params["alpha"][0, 0] * pe[None]
    return y.reshape(BS, 2 * H * 2 * W, out_dim)


# ---------------------------------- main ------------------------------------

if __name__ == "__main__":
    key = jax.random.PRNGKey(0)
    k_params, k_x = jax.random.split(key)

    BS, in_res, dim, out_dim = 2, 16, 32, 16          # N = 256 input tokens
    N = in_res * in_res

    params = init_bilinear_upsample(k_params, in_res=in_res, dim=dim,
                                    out_dim=out_dim)
    x = jax.random.normal(k_x, (BS, N, dim), jnp.float32)

    fwd = jax.jit(functools.partial(bilinear_upsample_forward, in_res=in_res))
    y = jax.block_until_ready(fwd(params, x))

    assert y.shape == (BS, 4 * N, out_dim), y.shape
    assert bool(jnp.all(jnp.isfinite(y)))

    y_ref = reference_forward(params, x, in_res=in_res)
    err = float(jnp.max(jnp.abs(y - y_ref)))
    assert err < 2e-3, f"max abs err {err}"

    print("KERNEL_OK")
</pallas_src>

<mosaic_0001>
module attributes {stable_mosaic.version = 11 : i64} {
  func.func @_upsample_ln_linear_kernel(%arg0: i32, %arg1: memref<1x32x256xf32, #tpu.memory_space<vmem>>, %arg2: memref<256x1024xf32, #tpu.memory_space<vmem>>, %arg3: memref<32x1xf32, #tpu.memory_space<vmem>>, %arg4: memref<32x1xf32, #tpu.memory_space<vmem>>, %arg5: memref<16x32xf32, #tpu.memory_space<vmem>>, %arg6: memref<16x1xf32, #tpu.memory_space<vmem>>, %arg7: memref<16x1024xf32, #tpu.memory_space<vmem>>, %arg8: memref<1x1xf32, #tpu.memory_space<smem>>, %arg9: memref<1x16x1024xf32, #tpu.memory_space<vmem>>) attributes {dimension_semantics = [#tpu.dimension_semantics<parallel>], iteration_bounds = array<i64: 2>, scalar_prefetch = 0 : i64, scratch_operands = 0 : i64, tpu.core_type = #tpu.core_type<tc>, window_params = [{transform_indices = @transform_0, window_bounds = array<i64: 1, 32, 256>}, {pipeline_mode = #tpu.pipeline_mode<synchronous>, transform_indices = @transform_1, window_bounds = array<i64: 256, 1024>}, {pipeline_mode = #tpu.pipeline_mode<synchronous>, transform_indices = @transform_2, window_bounds = array<i64: 32, 1>}, {pipeline_mode = #tpu.pipeline_mode<synchronous>, transform_indices = @transform_3, window_bounds = array<i64: 32, 1>}, {pipeline_mode = #tpu.pipeline_mode<synchronous>, transform_indices = @transform_4, window_bounds = array<i64: 16, 32>}, {pipeline_mode = #tpu.pipeline_mode<synchronous>, transform_indices = @transform_5, window_bounds = array<i64: 16, 1>}, {pipeline_mode = #tpu.pipeline_mode<synchronous>, transform_indices = @transform_6, window_bounds = array<i64: 16, 1024>}, {transform_indices = @transform_7, window_bounds = array<i64: 1, 1>}, {transform_indices = @transform_8, window_bounds = array<i64: 1, 16, 1024>}]} {
    %c0 = arith.constant 0 : index
    %c0_0 = arith.constant 0 : index
    %c0_1 = arith.constant 0 : index
    %0 = vector.load %arg1[%c0, %c0_0, %c0_1] : memref<1x32x256xf32, #tpu.memory_space<vmem>>, vector<1x32x256xf32>
    %1 = vector.shape_cast %0 : vector<1x32x256xf32> to vector<32x256xf32>
    %c0_2 = arith.constant 0 : index
    %c0_3 = arith.constant 0 : index
    %2 = vector.load %arg2[%c0_2, %c0_3] : memref<256x1024xf32, #tpu.memory_space<vmem>>, vector<256x1024xf32>
    %cst = arith.constant dense<0.000000e+00> : vector<32x1024xf32>
    %3 = tpu.matmul %1, %2, %cst {dimension_numbers = #tpu.dot_dimension_numbers<[1], [0], [0], [1], [0, 0, 1, 1], [], []>} : vector<32x256xf32>, vector<256x1024xf32>, vector<32x1024xf32> -> vector<32x1024xf32>
    %cst_4 = arith.constant dense<0.000000e+00> : vector<1024xf32>
    %4 = vector.multi_reduction <add>, %3, %cst_4 [0] : vector<32x1024xf32> to vector<1024xf32>
    %5 = vector.shape_cast %4 : vector<1024xf32> to vector<1x1024xf32>
    %cst_5 = arith.constant 3.200000e+01 : f32
    %6 = vector.broadcast %cst_5 : f32 to vector<1x1024xf32>
    %7 = arith.divf %5, %6 : vector<1x1024xf32>
    %8 = vector.broadcast %7 : vector<1x1024xf32> to vector<32x1024xf32>
    %9 = arith.subf %3, %8 : vector<32x1024xf32>
    %10 = arith.mulf %9, %9 : vector<32x1024xf32>
    %cst_6 = arith.constant dense<0.000000e+00> : vector<1024xf32>
    %11 = vector.multi_reduction <add>, %10, %cst_6 [0] : vector<32x1024xf32> to vector<1024xf32>
    %12 = vector.shape_cast %11 : vector<1024xf32> to vector<1x1024xf32>
    %cst_7 = arith.constant 3.200000e+01 : f32
    %13 = vector.broadcast %cst_7 : f32 to vector<1x1024xf32>
    %14 = arith.divf %12, %13 : vector<1x1024xf32>
    %cst_8 = arith.constant 9.99999974E-6 : f32
    %15 = vector.broadcast %cst_8 : f32 to vector<1x1024xf32>
    %16 = arith.addf %14, %15 : vector<1x1024xf32>
    %17 = math.rsqrt %16 : vector<1x1024xf32>
    %18 = vector.broadcast %17 : vector<1x1024xf32> to vector<32x1024xf32>
    %19 = arith.mulf %9, %18 : vector<32x1024xf32>
    %c0_9 = arith.constant 0 : index
    %c0_10 = arith.constant 0 : index
    %20 = vector.load %arg3[%c0_9, %c0_10] : memref<32x1xf32, #tpu.memory_space<vmem>>, vector<32x1xf32>
    %21 = vector.broadcast %20 : vector<32x1xf32> to vector<32x1024xf32>
    %22 = arith.mulf %19, %21 : vector<32x1024xf32>
    %c0_11 = arith.constant 0 : index
    %c0_12 = arith.constant 0 : index
    %23 = vector.load %arg4[%c0_11, %c0_12] : memref<32x1xf32, #tpu.memory_space<vmem>>, vector<32x1xf32>
    %24 = vector.broadcast %23 : vector<32x1xf32> to vector<32x1024xf32>
    %25 = arith.addf %22, %24 : vector<32x1024xf32>
    %c0_13 = arith.constant 0 : index
    %c0_14 = arith.constant 0 : index
    %26 = vector.load %arg5[%c0_13, %c0_14] : memref<16x32xf32, #tpu.memory_space<vmem>>, vector<16x32xf32>
    %cst_15 = arith.constant dense<0.000000e+00> : vector<16x1024xf32>
    %27 = tpu.matmul %26, %25, %cst_15 {dimension_numbers = #tpu.dot_dimension_numbers<[1], [0], [0], [1], [0, 0, 1, 1], [], []>} : vector<16x32xf32>, vector<32x1024xf32>, vector<16x1024xf32> -> vector<16x1024xf32>
    %c0_16 = arith.constant 0 : index
    %c0_17 = arith.constant 0 : index
    %28 = vector.load %arg6[%c0_16, %c0_17] : memref<16x1xf32, #tpu.memory_space<vmem>>, vector<16x1xf32>
    %29 = vector.broadcast %28 : vector<16x1xf32> to vector<16x1024xf32>
    %30 = arith.addf %27, %29 : vector<16x1024xf32>
    %c0_18 = arith.constant 0 : index
    %c0_19 = arith.constant 0 : index
    %31 = memref.load %arg8[%c0_18, %c0_19] : memref<1x1xf32, #tpu.memory_space<smem>>
    %c0_20 = arith.constant 0 : index
    %c0_21 = arith.constant 0 : index
    %32 = vector.load %arg7[%c0_20, %c0_21] : memref<16x1024xf32, #tpu.memory_space<vmem>>, vector<16x1024xf32>
    %33 = vector.broadcast %31 : f32 to vector<16x1024xf32>
    %34 = arith.mulf %33, %32 : vector<16x1024xf32>
    %35 = arith.addf %30, %34 : vector<16x1024xf32>
    %c0_22 = arith.constant 0 : index
    %c0_23 = arith.constant 0 : index
    %c0_24 = arith.constant 0 : index
    %36 = vector.load %arg9[%c0_22, %c0_23, %c0_24] : memref<1x16x1024xf32, #tpu.memory_space<vmem>>, vector<1x16x1024xf32>
    %37 = vector.shape_cast %36 : vector<1x16x1024xf32> to vector<16x1024xf32>
    %38 = vector.shape_cast %35 : vector<16x1024xf32> to vector<1x16x1024xf32>
    tpu.vector_store %arg9[%c0_22, %c0_23, %c0_24], %38 {strides = array<i32>} : memref<1x16x1024xf32, #tpu.memory_space<vmem>>, vector<1x16x1024xf32>,
    return
  }
  func.func @transform_0(%arg0: i32) -> (i32, i32, i32) {
    %c0_i32 = arith.constant 0 : i32
    %c0_i32_0 = arith.constant 0 : i32
    %c0_i32_1 = arith.constant 0 : i32
    return %arg0, %c0_i32, %c0_i32_0 : i32, i32, i32
  }
  func.func @transform_1(%arg0: i32) -> (i32, i32) {
    %c0_i32 = arith.constant 0 : i32
    %c0_i32_0 = arith.constant 0 : i32
    %c0_i32_1 = arith.constant 0 : i32
    return %c0_i32, %c0_i32_0 : i32, i32
  }
  func.func @transform_2(%arg0: i32) -> (i32, i32) {
    %c0_i32 = arith.constant 0 : i32
    %c0_i32_0 = arith.constant 0 : i32
    %c0_i32_1 = arith.constant 0 : i32
    return %c0_i32, %c0_i32_0 : i32, i32
  }
  func.func @transform_3(%arg0: i32) -> (i32, i32) {
    %c0_i32 = arith.constant 0 : i32
    %c0_i32_0 = arith.constant 0 : i32
    %c0_i32_1 = arith.constant 0 : i32
    return %c0_i32, %c0_i32_0 : i32, i32
  }
  func.func @transform_4(%arg0: i32) -> (i32, i32) {
    %c0_i32 = arith.constant 0 : i32
    %c0_i32_0 = arith.constant 0 : i32
    %c0_i32_1 = arith.constant 0 : i32
    return %c0_i32, %c0_i32_0 : i32, i32
  }
  func.func @transform_5(%arg0: i32) -> (i32, i32) {
    %c0_i32 = arith.constant 0 : i32
    %c0_i32_0 = arith.constant 0 : i32
    %c0_i32_1 = arith.constant 0 : i32
    return %c0_i32, %c0_i32_0 : i32, i32
  }
  func.func @transform_6(%arg0: i32) -> (i32, i32) {
    %c0_i32 = arith.constant 0 : i32
    %c0_i32_0 = arith.constant 0 : i32
    %c0_i32_1 = arith.constant 0 : i32
    return %c0_i32, %c0_i32_0 : i32, i32
  }
  func.func @transform_7(%arg0: i32) -> (i32, i32) {
    %c0_i32 = arith.constant 0 : i32
    %c0_i32_0 = arith.constant 0 : i32
    %c0_i32_1 = arith.constant 0 : i32
    return %c0_i32, %c0_i32_0 : i32, i32
  }
  func.func @transform_8(%arg0: i32) -> (i32, i32, i32) {
    %c0_i32 = arith.constant 0 : i32
    %c0_i32_0 = arith.constant 0 : i32
    %c0_i32_1 = arith.constant 0 : i32
    return %arg0, %c0_i32, %c0_i32_0 : i32, i32, i32
  }
}

</mosaic_0001>

<llo_original>
// kernel: bilinear_upsample_forward.1
$region0: #{bilinear_upsample_forward.1}
  #allocation0 [shape = 'u32[]', space=smem, size = 0x4, offset = 0x4, fixed_abs, tag = 'smem constant byte address 0x4 - core index']
  #allocation1 [shape = 'u32[144,128]{1,0:T(1,128)}', space=vmem, size = 0x12000, scoped, tag = 'internal scratch']
  #allocation2 [shape = 'f32[1,1]{1,0:T(1,128)S(6)}', space=smem, size = 0x200, scoped, tag = 'scoped memory for bilinear_upsample_forward.1']
  %s0 = inlined_call_operand.hbm [shape: f32[2,32,256], index: 0, kind: input, shape index: {}]
  %s1 = inlined_call_operand.hbm [shape: f32[256,1024], index: 1, kind: input, shape index: {}]
  %s2 = inlined_call_operand.vmem [shape: f32[32,1], index: 2, kind: input, shape index: {}]
  %s3 = inlined_call_operand.vmem [shape: f32[32,1], index: 3, kind: input, shape index: {}]
  %s4 = inlined_call_operand.vmem [shape: f32[16,32], index: 4, kind: input, shape index: {}]
  %s5 = inlined_call_operand.vmem [shape: f32[16,1], index: 5, kind: input, shape index: {}]
  %s6 = inlined_call_operand.hbm [shape: f32[16,1024], index: 6, kind: input, shape index: {}]
  %s7 = inlined_call_operand.<no memory space> [shape: f32[1,1], index: 7, kind: input, shape index: {}]
  %s8 = inlined_call_operand.vmem [shape: f32[2,16,1024], index: 8, kind: output, shape index: {}]
  %s9 = sld [smem:[#allocation0]]
  $region77: #{bilinear_upsample_forward.1} parent=0
    _
  %s11 = ssub.s32 1, %s9
  %s12 = scalar_select 0, %s11, %s9
  %13 = sst [smem:[#allocation2]] %s7
  $region1: #{bilinear_upsample_forward.1} parent=0
    #allocation3 [shape = 'u8[65536]{0}', space=vmem, size = 0x10000, scoped, tag = 'input window, operand 0']
    #allocation4 [shape = 's32[2]{0}', space=sflag, size = 0x8, scoped, tag = 'scoped memory for bilinear_upsample_forward.1']
    #allocation5 [shape = 'u8[1048576]{0}', space=vmem, size = 0x100000, scoped, tag = 'input window, operand 1, single buffered']
    #allocation6 [shape = 's32[1]{0}', space=sflag, size = 0x4, scoped, tag = 'scoped memory for bilinear_upsample_forward.1']
    #allocation7 [shape = 'u8[65536]{0}', space=vmem, size = 0x10000, scoped, tag = 'input window, operand 6, single buffered']
    %14 = vsyncpa [#allocation4], 0
    %s15 = scalar_lea.sflag [#allocation4], 1
    %16 = vsyncpa %s15, 0
    %17 = vsyncpa [#allocation6], 0
    loop: start=0, step=1, limit=4
    $region2: #{bilinear_upsample_forward.1} parent=1 // loop_pre_header
      _
    $region3: #{bilinear_upsample_forward.1} parent=1 // loop_header
      %s19 = sphi 0, %s23
      %p20 = scmp.ge.s32.totalorder %s19, 4
      %s29 = sphi 0, %s31
      %s32 = sphi 0, %s29
      %s33 = sphi 0, %s32
      %s49 = sphi 0, %s33
      %s53 = sphi 0, %s53
      %s55 = sphi 0, %s53
      %s56 = sphi 0, %s55
      %s70 = sphi 0, %s56
      %s74 = sphi 0, %s74
      %s76 = sphi 0, %s74
      %s77 = sphi 0, %s76
      %s91 = sphi 0, %s77
      %s95 = sphi 0, %s95
      %s97 = sphi 0, %s95
      %s98 = sphi 0, %s97
      %s112 = sphi 0, %s98
      %s116 = sphi 0, %s116
      %s118 = sphi 0, %s116
      %s119 = sphi 0, %s118
      %s133 = sphi 0, %s119
      %s137 = sphi 0, %s137
      %s139 = sphi 0, %s137
      %s140 = sphi 0, %s139
      %s154 = sphi 0, %s140
      %s158 = sphi 0, %s158
      %s160 = sphi 0, %s158
      %s161 = sphi 0, %s160
      %s175 = sphi 0, %s161
      %s179 = sphi 0, %s179
      %s181 = sphi 0, %s179
      %s182 = sphi 0, %s181
      %s196 = sphi 0, %s182
      %s202 = sphi 0, %s204
      %s205 = sphi 0, %s202
      %s206 = sphi 0, %s205
      %s222 = sphi 0, %s206
    $region4: #{bilinear_upsample_forward.1} parent=1 // loop_header_branch
      %22 = sbr.rel (%p20) target = $region8
    $region5: #{bilinear_upsample_forward.1} parent=1 // loop_body
      %s24 = ssub.s32 %s19, 1
      %s25 = ssub.s32 %s19, 2
      %s26 = sadd.s32 %s19, 1
      %s27 = ssub.s32 %s19, %s26
      %p28 = scmp.eq.s32.totalorder %s27, 0
      %s30 = sadd.s32 %s29, 1
      %s31 = scalar_select %p28, %s29, %s30
      %p34 = pneg %p28
      %p35 = scmp.eq.s32.totalorder %s19, 1
      %p36 = por %p34, %p35
      %p37 = scmp.ne.s32.totalorder %s29, %s32
      %p38 = scmp.eq.s32.totalorder %s19, 0
      %p39 = por %p37, %p38
      %p40 = scmp.ne.s32.totalorder %s29, %s32
      %p41 = scmp.eq.s32.totalorder %s24, 1
      %p42 = por %p40, %p41
      %p43 = scmp.ne.s32.totalorder %s32, %s33
      %p44 = scmp.eq.s32.totalorder %s24, 0
      %p45 = por %p43, %p44
      %p46 = scmp.ne.s32.totalorder %s32, %s33
      %p47 = scmp.eq.s32.totalorder %s25, 1
      %p48 = por %p46, %p47
      %p50 = scmp.ne.s32.totalorder %s33, %s49
      %p51 = scmp.eq.s32.totalorder %s25, 0
      %p52 = por %p50, %p51
      %s54 = sadd.s32 %s53, 1
      %p57 = scmp.eq.s32.totalorder %s19, 1
      %p58 = scmp.ne.s32.totalorder %s53, %s55
      %p59 = scmp.eq.s32.totalorder %s19, 0
      %p60 = por %p58, %p59
      %p61 = scmp.ne.s32.totalorder %s53, %s55
      %p62 = scmp.eq.s32.totalorder %s24, 1
      %p63 = por %p61, %p62
      %p64 = scmp.ne.s32.totalorder %s55, %s56
      %p65 = scmp.eq.s32.totalorder %s24, 0
      %p66 = por %p64, %p65
      %p67 = scmp.ne.s32.totalorder %s55, %s56
      %p68 = scmp.eq.s32.totalorder %s25, 1
      %p69 = por %p67, %p68
      %p71 = scmp.ne.s32.totalorder %s56, %s70
      %p72 = scmp.eq.s32.totalorder %s25, 0
      %p73 = por %p71, %p72
      %s75 = sadd.s32 %s74, 1
      %p78 = scmp.eq.s32.totalorder %s19, 1
      %p79 = scmp.ne.s32.totalorder %s74, %s76
      %p80 = scmp.eq.s32.totalorder %s19, 0
      %p81 = por %p79, %p80
      %p82 = scmp.ne.s32.totalorder %s74, %s76
      %p83 = scmp.eq.s32.totalorder %s24, 1
      %p84 = por %p82, %p83
      %p85 = scmp.ne.s32.totalorder %s76, %s77
      %p86 = scmp.eq.s32.totalorder %s24, 0
      %p87 = por %p85, %p86
      %p88 = scmp.ne.s32.totalorder %s76, %s77
      %p89 = scmp.eq.s32.totalorder %s25, 1
      %p90 = por %p88, %p89
      %p92 = scmp.ne.s32.totalorder %s77, %s91
      %p93 = scmp.eq.s32.totalorder %s25, 0
      %p94 = por %p92, %p93
      %s96 = sadd.s32 %s95, 1
      %p99 = scmp.eq.s32.totalorder %s19, 1
      %p100 = scmp.ne.s32.totalorder %s95, %s97
      %p101 = scmp.eq.s32.totalorder %s19, 0
      %p102 = por %p100, %p101
      %p103 = scmp.ne.s32.totalorder %s95, %s97
      %p104 = scmp.eq.s32.totalorder %s24, 1
      %p105 = por %p103, %p104
      %p106 = scmp.ne.s32.totalorder %s97, %s98
      %p107 = scmp.eq.s32.totalorder %s24, 0
      %p108 = por %p106, %p107
      %p109 = scmp.ne.s32.totalorder %s97, %s98
      %p110 = scmp.eq.s32.totalorder %s25, 1
      %p111 = por %p109, %p110
      %p113 = scmp.ne.s32.totalorder %s98, %s112
      %p114 = scmp.eq.s32.totalorder %s25, 0
      %p115 = por %p113, %p114
      %s117 = sadd.s32 %s116, 1
      %p120 = scmp.eq.s32.totalorder %s19, 1
      %p121 = scmp.ne.s32.totalorder %s116, %s118
      %p122 = scmp.eq.s32.totalorder %s19, 0
      %p123 = por %p121, %p122
      %p124 = scmp.ne.s32.totalorder %s116, %s118
      %p125 = scmp.eq.s32.totalorder %s24, 1
      %p126 = por %p124, %p125
      %p127 = scmp.ne.s32.totalorder %s118, %s119
      %p128 = scmp.eq.s32.totalorder %s24, 0
      %p129 = por %p127, %p128
      %p130 = scmp.ne.s32.totalorder %s118, %s119
      %p131 = scmp.eq.s32.totalorder %s25, 1
      %p132 = por %p130, %p131
      %p134 = scmp.ne.s32.totalorder %s119, %s133
      %p135 = scmp.eq.s32.totalorder %s25, 0
      %p136 = por %p134, %p135
      %s138 = sadd.s32 %s137, 1
      %p141 = scmp.eq.s32.totalorder %s19, 1
      %p142 = scmp.ne.s32.totalorder %s137, %s139
      %p143 = scmp.eq.s32.totalorder %s19, 0
      %p144 = por %p142, %p143
      %p145 = scmp.ne.s32.totalorder %s137, %s139
      %p146 = scmp.eq.s32.totalorder %s24, 1
      %p147 = por %p145, %p146
      %p148 = scmp.ne.s32.totalorder %s139, %s140
      %p149 = scmp.eq.s32.totalorder %s24, 0
      %p150 = por %p148, %p149
      %p151 = scmp.ne.s32.totalorder %s139, %s140
      %p152 = scmp.eq.s32.totalorder %s25, 1
      %p153 = por %p151, %p152
      %p155 = scmp.ne.s32.totalorder %s140, %s154
      %p156 = scmp.eq.s32.totalorder %s25, 0
      %p157 = por %p155, %p156
      %s159 = sadd.s32 %s158, 1
      %p162 = scmp.eq.s32.totalorder %s19, 1
      %p163 = scmp.ne.s32.totalorder %s158, %s160
      %p164 = scmp.eq.s32.totalorder %s19, 0
      %p165 = por %p163, %p164
      %p166 = scmp.ne.s32.totalorder %s158, %s160
      %p167 = scmp.eq.s32.totalorder %s24, 1
      %p168 = por %p166, %p167
      %p169 = scmp.ne.s32.totalorder %s160, %s161
      %p170 = scmp.eq.s32.totalorder %s24, 0
      %p171 = por %p169, %p170
      %p172 = scmp.ne.s32.totalorder %s160, %s161
      %p173 = scmp.eq.s32.totalorder %s25, 1
      %p174 = por %p172, %p173
      %p176 = scmp.ne.s32.totalorder %s161, %s175
      %p177 = scmp.eq.s32.totalorder %s25, 0
      %p178 = por %p176, %p177
      %s180 = sadd.s32 %s179, 1
      %p183 = scmp.eq.s32.totalorder %s19, 1
      %p184 = scmp.ne.s32.totalorder %s179, %s181
      %p185 = scmp.eq.s32.totalorder %s19, 0
      %p186 = por %p184, %p185
      %p187 = scmp.ne.s32.totalorder %s179, %s181
      %p188 = scmp.eq.s32.totalorder %s24, 1
      %p189 = por %p187, %p188
      %p190 = scmp.ne.s32.totalorder %s181, %s182
      %p191 = scmp.eq.s32.totalorder %s24, 0
      %p192 = por %p190, %p191
      %p193 = scmp.ne.s32.totalorder %s181, %s182
      %p194 = scmp.eq.s32.totalorder %s25, 1
      %p195 = por %p193, %p194
      %p197 = scmp.ne.s32.totalorder %s182, %s196
      %p198 = scmp.eq.s32.totalorder %s25, 0
      %p199 = por %p197, %p198
      %s200 = ssub.s32 %s19, %s26
      %p201 = scmp.eq.s32.totalorder %s200, 0
      %s203 = sadd.s32 %s202, 1
      %s204 = scalar_select %p201, %s202, %s203
      %p207 = pneg %p201
      %p208 = scmp.eq.s32.totalorder %s19, 1
      %p209 = por %p207, %p208
      %p210 = scmp.ne.s32.totalorder %s202, %s205
      %p211 = scmp.eq.s32.totalorder %s19, 0
      %p212 = por %p210, %p211
      %p213 = scmp.ne.s32.totalorder %s202, %s205
      %p214 = scmp.eq.s32.totalorder %s24, 1
      %p215 = por %p213, %p214
      %p216 = scmp.ne.s32.totalorder %s205, %s206
      %p217 = scmp.eq.s32.totalorder %s24, 0
      %p218 = por %p216, %p217
      %p219 = scmp.ne.s32.totalorder %s205, %s206
      %p220 = scmp.eq.s32.totalorder %s25, 1
      %p221 = por %p219, %p220
      %p223 = scmp.ne.s32.totalorder %s206, %s222
      %p224 = scmp.eq.s32.totalorder %s25, 0
      %p225 = por %p223, %p224
      %p226 = scmp.le.s32.totalorder 1, %s19
      %p227 = scmp.lt.s32.totalorder %s19, 3
      %p228 = pnand %p226, %p227
      %p229 = pneg %p228
      // Predicated region
      $region9: #{bilinear_upsample_forward.1} parent=5 // pred_check
        _
      $region10: #{bilinear_upsample_forward.1} parent=5 // pred_check_branch
        %231 = sbr.rel (%p228) target = $region12
      $region11: #{bilinear_upsample_forward.1} parent=5 // pred_region
        %s232 = ssub.s32 %s19, 1
        // Predicated region
        $region13: #{bilinear_upsample_forward.1} parent=11 // pred_check
          %p233 = pneg %p66
        $region14: #{bilinear_upsample_forward.1} parent=11 // pred_check_branch
          %235 = sbr.rel (%p233) target = $region16
        $region15: #{bilinear_upsample_forward.1} parent=11 // pred_region
          %s237 = ssub.s32 32768, 32768
          %238 = vsyncadd [#allocation6], %s237
          %s239 = sshll.u32 [#allocation5], 4
          %s240 = int_to_ptr.vmem [resolvable:$true] %s239
          %245 = dma.hbm_to_vmem [thread:$0]  %s1, 32768, %s240, [#allocation6], 1024, 1024, 64
        $region16: #{bilinear_upsample_forward.1} parent=11 // pred_fallthru
          _
        // Predicated region
        $region17: #{bilinear_upsample_forward.1} parent=11 // pred_check
          %p246 = pneg %p87
        $region18: #{bilinear_upsample_forward.1} parent=11 // pred_check_branch
          %248 = sbr.rel (%p246) target = $region20
        $region19: #{bilinear_upsample_forward.1} parent=11 // pred_region
          _
        $region20: #{bilinear_upsample_forward.1} parent=11 // pred_fallthru
          _
        // Predicated region
        $region21: #{bilinear_upsample_forward.1} parent=11 // pred_check
          %p249 = pneg %p108
        $region22: #{bilinear_upsample_forward.1} parent=11 // pred_check_branch
          %251 = sbr.rel (%p249) target = $region24
        $region23: #{bilinear_upsample_forward.1} parent=11 // pred_region
          _
        $region24: #{bilinear_upsample_forward.1} parent=11 // pred_fallthru
          _
        // Predicated region
        $region25: #{bilinear_upsample_forward.1} parent=11 // pred_check
          %p252 = pneg %p129
        $region26: #{bilinear_upsample_forward.1} parent=11 // pred_check_branch
          %254 = sbr.rel (%p252) target = $region28
        $region27: #{bilinear_upsample_forward.1} parent=11 // pred_region
          _
        $region28: #{bilinear_upsample_forward.1} parent=11 // pred_fallthru
          _
        // Predicated region
        $region29: #{bilinear_upsample_forward.1} parent=11 // pred_check
          %p255 = pneg %p150
        $region30: #{bilinear_upsample_forward.1} parent=11 // pred_check_branch
          %257 = sbr.rel (%p255) target = $region32
        $region31: #{bilinear_upsample_forward.1} parent=11 // pred_region
          _
        $region32: #{bilinear_upsample_forward.1} parent=11 // pred_fallthru
          _
        // Predicated region
        $region33: #{bilinear_upsample_forward.1} parent=11 // pred_check
          %p258 = pneg %p171
        $region34: #{bilinear_upsample_forward.1} parent=11 // pred_check_branch
          %260 = sbr.rel (%p258) target = $region36
        $region35: #{bilinear_upsample_forward.1} parent=11 // pred_region
          %s262 = ssub.s32 2048, 2048
          %263 = vsyncadd [#allocation6], %s262
          %s264 = sshll.u32 [#allocation7], 4
          %s265 = int_to_ptr.vmem [resolvable:$true] %s264
          %270 = dma.hbm_to_vmem [thread:$0]  %s6, 2048, %s265, [#allocation6], 1024, 1024, 64
        $region36: #{bilinear_upsample_forward.1} parent=11 // pred_fallthru
          _
        // Predicated region
        $region37: #{bilinear_upsample_forward.1} parent=11 // pred_check
          %p271 = pneg %p192
        $region38: #{bilinear_upsample_forward.1} parent=11 // pred_check_branch
          %273 = sbr.rel (%p271) target = $region40
        $region39: #{bilinear_upsample_forward.1} parent=11 // pred_region
          _
        $region40: #{bilinear_upsample_forward.1} parent=11 // pred_fallthru
          _
      $region12: #{bilinear_upsample_forward.1} parent=5 // pred_fallthru
        _
      %p274 = scmp.lt.s32.totalorder %s19, 2
      // Predicated region
      $region41: #{bilinear_upsample_forward.1} parent=5 // pred_check
        %p275 = pneg %p274
      $region42: #{bilinear_upsample_forward.1} parent=5 // pred_check_branch
        %277 = sbr.rel (%p275) target = $region44
      $region43: #{bilinear_upsample_forward.1} parent=5 // pred_region
        // Predicated region
        $region45: #{bilinear_upsample_forward.1} parent=43 // pred_check
          %p278 = pneg %p39
        $region46: #{bilinear_upsample_forward.1} parent=43 // pred_check_branch
          %280 = sbr.rel (%p278) target = $region48
        $region47: #{bilinear_upsample_forward.1} parent=43 // pred_region
          %s281 = sand.u32 %s29, 1
          %s282 = scalar_lea.sflag [#allocation4], %s281
          %s283 = sand.u32 %s29, 1
          %s284 = smul.addr %s283, 64
          %s285 = scalar_lea.vmem [#allocation3], %s284
          %s287 = ssub.s32 1024, 1024
          %288 = vsyncadd %s282, %s287
          %s289 = smul.addr %s19, 8
          %s290 = smul.addr %s289, 128
          %s291 = scalar_lea.hbm %s0, %s290
          %s292 = sshll.u32 %s285, 4
          %s293 = int_to_ptr.vmem [resolvable:$true] %s292
          %298 = dma.hbm_to_vmem [thread:$0]  %s291, 1024, %s293, %s282, 256, 256, 16
        $region48: #{bilinear_upsample_forward.1} parent=43 // pred_fallthru
          _
      $region44: #{bilinear_upsample_forward.1} parent=5 // pred_fallthru
        _
      %p299 = scmp.le.s32.totalorder 1, %s19
      %p300 = scmp.lt.s32.totalorder %s19, 3
      %p301 = pnand %p299, %p300
      %p302 = pneg %p301
      // Predicated region
      $region49: #{bilinear_upsample_forward.1} parent=5 // pred_check
        _
      $region50: #{bilinear_upsample_forward.1} parent=5 // pred_check_branch
        %304 = sbr.rel (%p301) target = $region52
      $region51: #{bilinear_upsample_forward.1} parent=5 // pred_region
        %s305 = ssub.s32 %s19, 1
        %s306 = sand.u32 %s32, 1
        %s307 = scalar_lea.sflag [#allocation4], %s306
        %s308 = sand.u32 %s32, 1
        %s309 = smul.addr %s308, 64
        %s310 = scalar_lea.vmem [#allocation3], %s309
        // Predicated region
        $region53: #{bilinear_upsample_forward.1} parent=51 // pred_check
          %p311 = pneg %p45
        $region54: #{bilinear_upsample_forward.1} parent=51 // pred_check_branch
          %313 = sbr.rel (%p311) target = $region56
        $region55: #{bilinear_upsample_forward.1} parent=51 // pred_region
          %314 = dma.done %s307, 1024
        $region56: #{bilinear_upsample_forward.1} parent=51 // pred_fallthru
          _
        // Predicated region
        $region57: #{bilinear_upsample_forward.1} parent=51 // pred_check
          %p315 = pneg %p66
        $region58: #{bilinear_upsample_forward.1} parent=51 // pred_check_branch
          %317 = sbr.rel (%p315) target = $region60
        $region59: #{bilinear_upsample_forward.1} parent=51 // pred_region
          %318 = dma.done [#allocation6], 32768
        $region60: #{bilinear_upsample_forward.1} parent=51 // pred_fallthru
          _
        // Predicated region
        $region61: #{bilinear_upsample_forward.1} parent=51 // pred_check
          %p319 = pneg %p171
        $region62: #{bilinear_upsample_forward.1} parent=51 // pred_check_branch
          %321 = sbr.rel (%p319) target = $region64
        $region63: #{bilinear_upsample_forward.1} parent=51 // pred_region
          %322 = dma.done [#allocation6], 2048
        $region64: #{bilinear_upsample_forward.1} parent=51 // pred_fallthru
          _
        %s323 = sand.u32 %s32, 1
        %s324 = scalar_lea.sflag [#allocation4], %s323
        %s325 = sand.u32 %s32, 1
        %s326 = smul.addr %s325, 64
        %s327 = scalar_lea.vmem [#allocation3], %s326
        %p328 = pneg %p45
        %p329 = pneg %p42
        %p330 = pneg %p66
        %p331 = pneg %p63
        %p332 = pneg %p87
        %p333 = pneg %p84
        %p334 = pneg %p108
        %p335 = pneg %p105
        %p336 = pneg %p129
        %p337 = pneg %p126
        %p338 = pneg %p150
        %p339 = pneg %p147
        %p340 = pneg %p171
        %p341 = pneg %p168
        %p342 = pneg %p192
        %p343 = pneg %p189
        %p344 = pneg %p218
        %p345 = pneg %p215
        %p346 = scmp.lt.s32.totalorder %s24, 1
        %s347 = scalar_select %p346, %s24, 1
        %s348 = smul.addr %s347, 16
        %s349 = smul.addr %s348, 8
        %s350 = scalar_lea.vmem %s8, %s349
        %p351 = scmp.lt.s32.totalorder %s24, 1
        %s352 = scalar_select %p351, %s24, 1
        %s353 = smul.addr %s352, 16
        %s354 = smul.addr %s353, 8
        %s355 = scalar_lea.vmem %s8, %s354
        %v356 = vld [vmem:[%s310] sm:$0xff]
        %v357 = vld [vmem:[%s310 + $0x8] sm:$0xff]
        %v358 = vld [vmem:[%s310 + $0x10] sm:$0xff]
        %v359 = vld [vmem:[%s310 + $0x18] sm:$0xff]
        %v360 = vld [vmem:[%s310 + $0x20] sm:$0xff]
        %v361 = vld [vmem:[%s310 + $0x28] sm:$0xff]
        %v362 = vld [vmem:[%s310 + $0x30] sm:$0xff]
        %v363 = vld [vmem:[%s310 + $0x38] sm:$0xff]
        %v364 = vld [vmem:[#allocation5] sm:$0xff]
        %v365 = vld [vmem:[#allocation5 + $0x8] sm:$0xff]
        %v366 = vld [vmem:[#allocation5 + $0x10] sm:$0xff]
        %v367 = vld [vmem:[#allocation5 + $0x18] sm:$0xff]
        %v368 = vld [vmem:[#allocation5 + $0x20] sm:$0xff]
        %v369 = vld [vmem:[#allocation5 + $0x28] sm:$0xff]
        %v370 = vld [vmem:[#allocation5 + $0x30] sm:$0xff]
        %v371 = vld [vmem:[#allocation5 + $0x38] sm:$0xff]
        %v372 = vld [vmem:[#allocation5 + $0x40] sm:$0xff]
        %v373 = vld [vmem:[#allocation5 + $0x48] sm:$0xff]
        %v374 = vld [vmem:[#allocation5 + $0x50] sm:$0xff]
        %v375 = vld [vmem:[#allocation5 + $0x58] sm:$0xff]
        %v376 = vld [vmem:[#allocation5 + $0x60] sm:$0xff]
        %v377 = vld [vmem:[#allocation5 + $0x68] sm:$0xff]
        %v378 = vld [vmem:[#allocation5 + $0x70] sm:$0xff]
        %v379 = vld [vmem:[#allocation5 + $0x78] sm:$0xff]
        %v380 = vld [vmem:[#allocation5 + $0x80] sm:$0xff]
        %v381 = vld [vmem:[#allocation5 + $0x88] sm:$0xff]
        %v382 = vld [vmem:[#allocation5 + $0x90] sm:$0xff]
        %v383 = vld [vmem:[#allocation5 + $0x98] sm:$0xff]
        %v384 = vld [vmem:[#allocation5 + $0xa0] sm:$0xff]
        %v385 = vld [vmem:[#allocation5 + $0xa8] sm:$0xff]
        %v386 = vld [vmem:[#allocation5 + $0xb0] sm:$0xff]
        %v387 = vld [vmem:[#allocation5 + $0xb8] sm:$0xff]
        %v388 = vld [vmem:[#allocation5 + $0xc0] sm:$0xff]
        %v389 = vld [vmem:[#allocation5 + $0xc8] sm:$0xff]
        %v390 = vld [vmem:[#allocation5 + $0xd0] sm:$0xff]
        %v391 = vld [vmem:[#allocation5 + $0xd8] sm:$0xff]
        %v392 = vld [vmem:[#allocation5 + $0xe0] sm:$0xff]
        %v393 = vld [vmem:[#allocation5 + $0xe8] sm:$0xff]
        %v394 = vld [vmem:[#allocation5 + $0xf0] sm:$0xff]
        %v395 = vld [vmem:[#allocation5 + $0xf8] sm:$0xff]
        %v396 = vld [vmem:[#allocation5 + $0x100] sm:$0xff]
        %v397 = vld [vmem:[#allocation5 + $0x108] sm:$0xff]
        %v398 = vld [vmem:[#allocation5 + $0x110] sm:$0xff]
        %v399 = vld [vmem:[#allocation5 + $0x118] sm:$0xff]
        %v400 = vld [vmem:[#allocation5 + $0x120] sm:$0xff]
        %v401 = vld [vmem:[#allocation5 + $0x128] sm:$0xff]
        %v402 = vld [vmem:[#allocation5 + $0x130] sm:$0xff]
        %v403 = vld [vmem:[#allocation5 + $0x138] sm:$0xff]
        %v404 = vld [vmem:[#allocation5 + $0x140] sm:$0xff]
        %v405 = vld [vmem:[#allocation5 + $0x148] sm:$0xff]
        %v406 = vld [vmem:[#allocation5 + $0x150] sm:$0xff]
        %v407 = vld [vmem:[#allocation5 + $0x158] sm:$0xff]
        %v408 = vld [vmem:[#allocation5 + $0x160] sm:$0xff]
        %v409 = vld [vmem:[#allocation5 + $0x168] sm:$0xff]
        %v410 = vld [vmem:[#allocation5 + $0x170] sm:$0xff]
        %v411 = vld [vmem:[#allocation5 + $0x178] sm:$0xff]
        %v412 = vld [vmem:[#allocation5 + $0x180] sm:$0xff]
        %v413 = vld [vmem:[#allocation5 + $0x188] sm:$0xff]
        %v414 = vld [vmem:[#allocation5 + $0x190] sm:$0xff]
        %v415 = vld [vmem:[#allocation5 + $0x198] sm:$0xff]
        %v416 = vld [vmem:[#allocation5 + $0x1a0] sm:$0xff]
        %v417 = vld [vmem:[#allocation5 + $0x1a8] sm:$0xff]
        %v418 = vld [vmem:[#allocation5 + $0x1b0] sm:$0xff]
        %v419 = vld [vmem:[#allocation5 + $0x1b8] sm:$0xff]
        %v420 = vld [vmem:[#allocation5 + $0x1c0] sm:$0xff]
        %v421 = vld [vmem:[#allocation5 + $0x1c8] sm:$0xff]
        %v422 = vld [vmem:[#allocation5 + $0x1d0] sm:$0xff]
        %v423 = vld [vmem:[#allocation5 + $0x1d8] sm:$0xff]
        %v424 = vld [vmem:[#allocation5 + $0x1e0] sm:$0xff]
        %v425 = vld [vmem:[#allocation5 + $0x1e8] sm:$0xff]
        %v426 = vld [vmem:[#allocation5 + $0x1f0] sm:$0xff]
        %v427 = vld [vmem:[#allocation5 + $0x1f8] sm:$0xff]
        %v428 = vld [vmem:[#allocation5 + $0x200] sm:$0xff]
        %v429 = vld [vmem:[#allocation5 + $0x208] sm:$0xff]
        %v430 = vld [vmem:[#allocation5 + $0x210] sm:$0xff]
        %v431 = vld [vmem:[#allocation5 + $0x218] sm:$0xff]
        %v432 = vld [vmem:[#allocation5 + $0x220] sm:$0xff]
        %v433 = vld [vmem:[#allocation5 + $0x228] sm:$0xff]
        %v434 = vld [vmem:[#allocation5 + $0x230] sm:$0xff]
        %v435 = vld [vmem:[#allocation5 + $0x238] sm:$0xff]
        %v436 = vld [vmem:[#allocation5 + $0x240] sm:$0xff]
        %v437 = vld [vmem:[#allocation5 + $0x248] sm:$0xff]
        %v438 = vld [vmem:[#allocation5 + $0x250] sm:$0xff]
        %v439 = vld [vmem:[#allocation5 + $0x258] sm:$0xff]
        %v440 = vld [vmem:[#allocation5 + $0x260] sm:$0xff]
        %v441 = vld [vmem:[#allocation5 + $0x268] sm:$0xff]
        %v442 = vld [vmem:[#allocation5 + $0x270] sm:$0xff]
        %v443 = vld [vmem:[#allocation5 + $0x278] sm:$0xff]
        %v444 = vld [vmem:[#allocation5 + $0x280] sm:$0xff]
        %v445 = vld [vmem:[#allocation5 + $0x288] sm:$0xff]
        %v446 = vld [vmem:[#allocation5 + $0x290] sm:$0xff]
        %v447 = vld [vmem:[#allocation5 + $0x298] sm:$0xff]
        %v448 = vld [vmem:[#allocation5 + $0x2a0] sm:$0xff]
        %v449 = vld [vmem:[#allocation5 + $0x2a8] sm:$0xff]
        %v450 = vld [vmem:[#allocation5 + $0x2b0] sm:$0xff]
        %v451 = vld [vmem:[#allocation5 + $0x2b8] sm:$0xff]
        %v452 = vld [vmem:[#allocation5 + $0x2c0] sm:$0xff]
        %v453 = vld [vmem:[#allocation5 + $0x2c8] sm:$0xff]
        %v454 = vld [vmem:[#allocation5 + $0x2d0] sm:$0xff]
        %v455 = vld [vmem:[#allocation5 + $0x2d8] sm:$0xff]
        %v456 = vld [vmem:[#allocation5 + $0x2e0] sm:$0xff]
        %v457 = vld [vmem:[#allocation5 + $0x2e8] sm:$0xff]
        %v458 = vld [vmem:[#allocation5 + $0x2f0] sm:$0xff]
        %v459 = vld [vmem:[#allocation5 + $0x2f8] sm:$0xff]
        %v460 = vld [vmem:[#allocation5 + $0x300] sm:$0xff]
        %v461 = vld [vmem:[#allocation5 + $0x308] sm:$0xff]
        %v462 = vld [vmem:[#allocation5 + $0x310] sm:$0xff]
        %v463 = vld [vmem:[#allocation5 + $0x318] sm:$0xff]
        %v464 = vld [vmem:[#allocation5 + $0x320] sm:$0xff]
        %v465 = vld [vmem:[#allocation5 + $0x328] sm:$0xff]
        %v466 = vld [vmem:[#allocation5 + $0x330] sm:$0xff]
        %v467 = vld [vmem:[#allocation5 + $0x338] sm:$0xff]
        %v468 = vld [vmem:[#allocation5 + $0x340] sm:$0xff]
        %v469 = vld [vmem:[#allocation5 + $0x348] sm:$0xff]
        %v470 = vld [vmem:[#allocation5 + $0x350] sm:$0xff]
        %v471 = vld [vmem:[#allocation5 + $0x358] sm:$0xff]
        %v472 = vld [vmem:[#allocation5 + $0x360] sm:$0xff]
        %v473 = vld [vmem:[#allocation5 + $0x368] sm:$0xff]
        %v474 = vld [vmem:[#allocation5 + $0x370] sm:$0xff]
        %v475 = vld [vmem:[#allocation5 + $0x378] sm:$0xff]
        %v476 = vld [vmem:[#allocation5 + $0x380] sm:$0xff]
        %v477 = vld [vmem:[#allocation5 + $0x388] sm:$0xff]
        %v478 = vld [vmem:[#allocation5 + $0x390] sm:$0xff]
        %v479 = vld [vmem:[#allocation5 + $0x398] sm:$0xff]
        %v480 = vld [vmem:[#allocation5 + $0x3a0] sm:$0xff]
        %v481 = vld [vmem:[#allocation5 + $0x3a8] sm:$0xff]
        %v482 = vld [vmem:[#allocation5 + $0x3b0] sm:$0xff]
        %v483 = vld [vmem:[#allocation5 + $0x3b8] sm:$0xff]
        %v484 = vld [vmem:[#allocation5 + $0x3c0] sm:$0xff]
        %v485 = vld [vmem:[#allocation5 + $0x3c8] sm:$0xff]
        %v486 = vld [vmem:[#allocation5 + $0x3d0] sm:$0xff]
        %v487 = vld [vmem:[#allocation5 + $0x3d8] sm:$0xff]
        %v488 = vld [vmem:[#allocation5 + $0x3e0] sm:$0xff]
        %v489 = vld [vmem:[#allocation5 + $0x3e8] sm:$0xff]
        %v490 = vld [vmem:[#allocation5 + $0x3f0] sm:$0xff]
        %v491 = vld [vmem:[#allocation5 + $0x3f8] sm:$0xff]
        %v492 = vld [vmem:[#allocation5 + $0x400] sm:$0xff]
        %v493 = vld [vmem:[#allocation5 + $0x408] sm:$0xff]
        %v494 = vld [vmem:[#allocation5 + $0x410] sm:$0xff]
        %v495 = vld [vmem:[#allocation5 + $0x418] sm:$0xff]
        %v496 = vld [vmem:[#allocation5 + $0x420] sm:$0xff]
        %v497 = vld [vmem:[#allocation5 + $0x428] sm:$0xff]
        %v498 = vld [vmem:[#allocation5 + $0x430] sm:$0xff]
        %v499 = vld [vmem:[#allocation5 + $0x438] sm:$0xff]
        %v500 = vld [vmem:[#allocation5 + $0x440] sm:$0xff]
        %v501 = vld [vmem:[#allocation5 + $0x448] sm:$0xff]
        %v502 = vld [vmem:[#allocation5 + $0x450] sm:$0xff]
        %v503 = vld [vmem:[#allocation5 + $0x458] sm:$0xff]
        %v504 = vld [vmem:[#allocation5 + $0x460] sm:$0xff]
        %v505 = vld [vmem:[#allocation5 + $0x468] sm:$0xff]
        %v506 = vld [vmem:[#allocation5 + $0x470] sm:$0xff]
        %v507 = vld [vmem:[#allocation5 + $0x478] sm:$0xff]
        %v508 = vld [vmem:[#allocation5 + $0x480] sm:$0xff]
        %v509 = vld [vmem:[#allocation5 + $0x488] sm:$0xff]
        %v510 = vld [vmem:[#allocation5 + $0x490] sm:$0xff]
        %v511 = vld [vmem:[#allocation5 + $0x498] sm:$0xff]
        %v512 = vld [vmem:[#allocation5 + $0x4a0] sm:$0xff]
        %v513 = vld [vmem:[#allocation5 + $0x4a8] sm:$0xff]
        %v514 = vld [vmem:[#allocation5 + $0x4b0] sm:$0xff]
        %v515 = vld [vmem:[#allocation5 + $0x4b8] sm:$0xff]
        %v516 = vld [vmem:[#allocation5 + $0x4c0] sm:$0xff]
        %v517 = vld [vmem:[#allocation5 + $0x4c8] sm:$0xff]
        %v518 = vld [vmem:[#allocation5 + $0x4d0] sm:$0xff]
        %v519 = vld [vmem:[#allocation5 + $0x4d8] sm:$0xff]
        %v520 = vld [vmem:[#allocation5 + $0x4e0] sm:$0xff]
        %v521 = vld [vmem:[#allocation5 + $0x4e8] sm:$0xff]
        %v522 = vld [vmem:[#allocation5 + $0x4f0] sm:$0xff]
        %v523 = vld [vmem:[#allocation5 + $0x4f8] sm:$0xff]
        %v524 = vld [vmem:[#allocation5 + $0x500] sm:$0xff]
        %v525 = vld [vmem:[#allocation5 + $0x508] sm:$0xff]
        %v526 = vld [vmem:[#allocation5 + $0x510] sm:$0xff]
        %v527 = vld [vmem:[#allocation5 + $0x518] sm:$0xff]
        %v528 = vld [vmem:[#allocation5 + $0x520] sm:$0xff]
        %v529 = vld [vmem:[#allocation5 + $0x528] sm:$0xff]
        %v530 = vld [vmem:[#allocation5 + $0x530] sm:$0xff]
        %v531 = vld [vmem:[#allocation5 + $0x538] sm:$0xff]
        %v532 = vld [vmem:[#allocation5 + $0x540] sm:$0xff]
        %v533 = vld [vmem:[#allocation5 + $0x548] sm:$0xff]
        %v534 = vld [vmem:[#allocation5 + $0x550] sm:$0xff]
        %v535 = vld [vmem:[#allocation5 + $0x558] sm:$0xff]
        %v536 = vld [vmem:[#allocation5 + $0x560] sm:$0xff]
        %v537 = vld [vmem:[#allocation5 + $0x568] sm:$0xff]
        %v538 = vld [vmem:[#allocation5 + $0x570] sm:$0xff]
        %v539 = vld [vmem:[#allocation5 + $0x578] sm:$0xff]
        %v540 = vld [vmem:[#allocation5 + $0x580] sm:$0xff]
        %v541 = vld [vmem:[#allocation5 + $0x588] sm:$0xff]
        %v542 = vld [vmem:[#allocation5 + $0x590] sm:$0xff]
        %v543 = vld [vmem:[#allocation5 + $0x598] sm:$0xff]
        %v544 = vld [vmem:[#allocation5 + $0x5a0] sm:$0xff]
        %v545 = vld [vmem:[#allocation5 + $0x5a8] sm:$0xff]
        %v546 = vld [vmem:[#allocation5 + $0x5b0] sm:$0xff]
        %v547 = vld [vmem:[#allocation5 + $0x5b8] sm:$0xff]
        %v548 = vld [vmem:[#allocation5 + $0x5c0] sm:$0xff]
        %v549 = vld [vmem:[#allocation5 + $0x5c8] sm:$0xff]
        %v550 = vld [vmem:[#allocation5 + $0x5d0] sm:$0xff]
        %v551 = vld [vmem:[#allocation5 + $0x5d8] sm:$0xff]
        %v552 = vld [vmem:[#allocation5 + $0x5e0] sm:$0xff]
        %v553 = vld [vmem:[#allocation5 + $0x5e8] sm:$0xff]
        %v554 = vld [vmem:[#allocation5 + $0x5f0] sm:$0xff]
        %v555 = vld [vmem:[#allocation5 + $0x5f8] sm:$0xff]
        %v556 = vld [vmem:[#allocation5 + $0x600] sm:$0xff]
        %v557 = vld [vmem:[#allocation5 + $0x608] sm:$0xff]
        %v558 = vld [vmem:[#allocation5 + $0x610] sm:$0xff]
        %v559 = vld [vmem:[#allocation5 + $0x618] sm:$0xff]
        %v560 = vld [vmem:[#allocation5 + $0x620] sm:$0xff]
        %v561 = vld [vmem:[#allocation5 + $0x628] sm:$0xff]
        %v562 = vld [vmem:[#allocation5 + $0x630] sm:$0xff]
        %v563 = vld [vmem:[#allocation5 + $0x638] sm:$0xff]
        %v564 = vld [vmem:[#allocation5 + $0x640] sm:$0xff]
        %v565 = vld [vmem:[#allocation5 + $0x648] sm:$0xff]
        %v566 = vld [vmem:[#allocation5 + $0x650] sm:$0xff]
        %v567 = vld [vmem:[#allocation5 + $0x658] sm:$0xff]
        %v568 = vld [vmem:[#allocation5 + $0x660] sm:$0xff]
        %v569 = vld [vmem:[#allocation5 + $0x668] sm:$0xff]
        %v570 = vld [vmem:[#allocation5 + $0x670] sm:$0xff]
        %v571 = vld [vmem:[#allocation5 + $0x678] sm:$0xff]
        %v572 = vld [vmem:[#allocation5 + $0x680] sm:$0xff]
        %v573 = vld [vmem:[#allocation5 + $0x688] sm:$0xff]
        %v574 = vld [vmem:[#allocation5 + $0x690] sm:$0xff]
        %v575 = vld [vmem:[#allocation5 + $0x698] sm:$0xff]
        %v576 = vld [vmem:[#allocation5 + $0x6a0] sm:$0xff]
        %v577 = vld [vmem:[#allocation5 + $0x6a8] sm:$0xff]
        %v578 = vld [vmem:[#allocation5 + $0x6b0] sm:$0xff]
        %v579 = vld [vmem:[#allocation5 + $0x6b8] sm:$0xff]
        %v580 = vld [vmem:[#allocation5 + $0x6c0] sm:$0xff]
        %v581 = vld [vmem:[#allocation5 + $0x6c8] sm:$0xff]
        %v582 = vld [vmem:[#allocation5 + $0x6d0] sm:$0xff]
        %v583 = vld [vmem:[#allocation5 + $0x6d8] sm:$0xff]
        %v584 = vld [vmem:[#allocation5 + $0x6e0] sm:$0xff]
        %v585 = vld [vmem:[#allocation5 + $0x6e8] sm:$0xff]
        %v586 = vld [vmem:[#allocation5 + $0x6f0] sm:$0xff]
        %v587 = vld [vmem:[#allocation5 + $0x6f8] sm:$0xff]
        %v588 = vld [vmem:[#allocation5 + $0x700] sm:$0xff]
        %v589 = vld [vmem:[#allocation5 + $0x708] sm:$0xff]
        %v590 = vld [vmem:[#allocation5 + $0x710] sm:$0xff]
        %v591 = vld [vmem:[#allocation5 + $0x718] sm:$0xff]
        %v592 = vld [vmem:[#allocation5 + $0x720] sm:$0xff]
        %v593 = vld [vmem:[#allocation5 + $0x728] sm:$0xff]
        %v594 = vld [vmem:[#allocation5 + $0x730] sm:$0xff]
        %v595 = vld [vmem:[#allocation5 + $0x738] sm:$0xff]
        %v596 = vld [vmem:[#allocation5 + $0x740] sm:$0xff]
        %v597 = vld [vmem:[#allocation5 + $0x748] sm:$0xff]
        %v598 = vld [vmem:[#allocation5 + $0x750] sm:$0xff]
        %v599 = vld [vmem:[#allocation5 + $0x758] sm:$0xff]
        %v600 = vld [vmem:[#allocation5 + $0x760] sm:$0xff]
        %v601 = vld [vmem:[#allocation5 + $0x768] sm:$0xff]
        %v602 = vld [vmem:[#allocation5 + $0x770] sm:$0xff]
        %v603 = vld [vmem:[#allocation5 + $0x778] sm:$0xff]
        %v604 = vld [vmem:[#allocation5 + $0x780] sm:$0xff]
        %v605 = vld [vmem:[#allocation5 + $0x788] sm:$0xff]
        %v606 = vld [vmem:[#allocation5 + $0x790] sm:$0xff]
        %v607 = vld [vmem:[#allocation5 + $0x798] sm:$0xff]
        %v608 = vld [vmem:[#allocation5 + $0x7a0] sm:$0xff]
        %v609 = vld [vmem:[#allocation5 + $0x7a8] sm:$0xff]
        %v610 = vld [vmem:[#allocation5 + $0x7b0] sm:$0xff]
        %v611 = vld [vmem:[#allocation5 + $0x7b8] sm:$0xff]
        %v612 = vld [vmem:[#allocation5 + $0x7c0] sm:$0xff]
        %v613 = vld [vmem:[#allocation5 + $0x7c8] sm:$0xff]
        %v614 = vld [vmem:[#allocation5 + $0x7d0] sm:$0xff]
        %v615 = vld [vmem:[#allocation5 + $0x7d8] sm:$0xff]
        %v616 = vld [vmem:[#allocation5 + $0x7e0] sm:$0xff]
        %v617 = vld [vmem:[#allocation5 + $0x7e8] sm:$0xff]
        %v618 = vld [vmem:[#allocation5 + $0x7f0] sm:$0xff]
        %v619 = vld [vmem:[#allocation5 + $0x7f8] sm:$0xff]
        %620 = vmatprep.subr.mxu0 %v365
        %621 = vmatpush1.msra.mxu0 %v364
        %622 = vmatprep.subr.mxu0 %v373
        %623 = vmatpush1.msra.mxu0 %v372
        %624 = vmatprep.subr.mxu0 %v381
        %625 = vmatpush1.msra.mxu0 %v380
        %626 = vmatprep.subr.mxu0 %v389
        %627 = vmatpush1.msra.mxu0 %v388
        %628 = vmatprep.subr.mxu0 %v397
        %629 = vmatpush1.msra.mxu0 %v396
        %630 = vmatprep.subr.mxu0 %v405
        %631 = vmatpush1.msra.mxu0 %v404
        %632 = vmatprep.subr.mxu0 %v413
        %633 = vmatpush1.msra.mxu0 %v412
        %634 = vmatprep.subr.mxu0 %v421
        %635 = vmatpush1.msra.mxu0 %v420
        %636 = vmatprep.subr.mxu0 %v429
        %637 = vmatpush1.msra.mxu0 %v428
        %638 = vmatprep.subr.mxu0 %v437
        %639 = vmatpush1.msra.mxu0 %v436
        %640 = vmatprep.subr.mxu0 %v445
        %641 = vmatpush1.msra.mxu0 %v444
        %642 = vmatprep.subr.mxu0 %v453
        %643 = vmatpush1.msra.mxu0 %v452
        %644 = vmatprep.subr.mxu0 %v461
        %645 = vmatpush1.msra.mxu0 %v460
        %646 = vmatprep.subr.mxu0 %v469
        %647 = vmatpush1.msra.mxu0 %v468
        %648 = vmatprep.subr.mxu0 %v477
        %649 = vmatpush1.msra.mxu0 %v476
        %650 = vmatprep.subr.mxu0 %v485
        %651 = vmatpush1.msra.mxu0 %v484
        %652 = vmatprep.subr.mxu0 %v493
        %653 = vmatpush1.msra.mxu0 %v492
        %654 = vmatprep.subr.mxu0 %v501
        %655 = vmatpush1.msra.mxu0 %v500
        %656 = vmatprep.subr.mxu0 %v509
        %657 = vmatpush1.msra.mxu0 %v508
        %658 = vmatprep.subr.mxu0 %v517
        %659 = vmatpush1.msra.mxu0 %v516
        %660 = vmatprep.subr.mxu0 %v525
        %661 = vmatpush1.msra.mxu0 %v524
        %662 = vmatprep.subr.mxu0 %v533
        %663 = vmatpush1.msra.mxu0 %v532
        %664 = vmatprep.subr.mxu0 %v541
        %665 = vmatpush1.msra.mxu0 %v540
        %666 = vmatprep.subr.mxu0 %v549
        %667 = vmatpush1.msra.mxu0 %v548
        %668 = vmatprep.subr.mxu0 %v557
        %669 = vmatpush1.msra.mxu0 %v556
        %670 = vmatprep.subr.mxu0 %v565
        %671 = vmatpush1.msra.mxu0 %v564
        %672 = vmatprep.subr.mxu0 %v573
        %673 = vmatpush1.msra.mxu0 %v572
        %674 = vmatprep.subr.mxu0 %v581
        %675 = vmatpush1.msra.mxu0 %v580
        %676 = vmatprep.subr.mxu0 %v589
        %677 = vmatpush1.msra.mxu0 %v588
        %678 = vmatprep.subr.mxu0 %v597
        %679 = vmatpush1.msra.mxu0 %v596
        %680 = vmatprep.subr.mxu0 %v605
        %681 = vmatpush1.msra.mxu0 %v604
        %682 = vmatprep.subr.mxu0 %v613
        %683 = vmatpush1.msra.mxu0 %v612
        %684 = vmatprep.mubr.f32.mxu0 %v357
        %685 = vmatmul.mubr.f32.gmra.mrb[0].mxu0 %v356
        %v686 = vpop.f32.mrb[0].mxu0
        %v687 = vadd.f32 0.0, %v686
        %v688 = vpop.f32.mrb[0].mxu0
        %v689 = vadd.f32 0.0, %v688
        %690 = vmatprep.mubr.f32.mxu0 %v359
        %691 = vmatmul.mubr.f32.gmra.mrb[0].mxu0 %v358
        %v692 = vpop.f32.mrb[0].mxu0
        %v693 = vadd.f32 0.0, %v692
        %v694 = vpop.f32.mrb[0].mxu0
        %v695 = vadd.f32 0.0, %v694
        %696 = vmatprep.mubr.f32.mxu0 %v361
        %697 = vmatmul.mubr.f32.gmra.mrb[0].mxu0 %v360
        %v698 = vpop.f32.mrb[0].mxu0
        %v699 = vadd.f32 0.0, %v698
        %v700 = vpop.f32.mrb[0].mxu0
        %v701 = vadd.f32 0.0, %v700
        %702 = vmatprep.mubr.f32.mxu0 %v363
        %703 = vmatmul.mubr.f32.gmra.mrb[0].mxu0 %v362
        %v704 = vpop.f32.mrb[0].mxu0
        %v705 = vadd.f32 0.0, %v704
        %v706 = vpop.f32.mrb[0].mxu0
        %v707 = vadd.f32 0.0, %v706
        %708 = vdwg.mxu0
        %709 = vmatprep.subr.mxu0 %v367
        %710 = vmatpush1.msra.mxu0 %v366
        %711 = vmatprep.subr.mxu0 %v375
        %712 = vmatpush1.msra.mxu0 %v374
        %713 = vmatprep.subr.mxu0 %v383
        %714 = vmatpush1.msra.mxu0 %v382
        %715 = vmatprep.subr.mxu0 %v391
        %716 = vmatpush1.msra.mxu0 %v390
        %717 = vmatprep.subr.mxu0 %v399
        %718 = vmatpush1.msra.mxu0 %v398
        %719 = vmatprep.subr.mxu0 %v407
        %720 = vmatpush1.msra.mxu0 %v406
        %721 = vmatprep.subr.mxu0 %v415
        %722 = vmatpush1.msra.mxu0 %v414
        %723 = vmatprep.subr.mxu0 %v423
        %724 = vmatpush1.msra.mxu0 %v422
        %725 = vmatprep.subr.mxu0 %v431
        %726 = vmatpush1.msra.mxu0 %v430
        %727 = vmatprep.subr.mxu0 %v439
        %728 = vmatpush1.msra.mxu0 %v438
        %729 = vmatprep.subr.mxu0 %v447
        %730 = vmatpush1.msra.mxu0 %v446
        %731 = vmatprep.subr.mxu0 %v455
        %732 = vmatpush1.msra.mxu0 %v454
        %733 = vmatprep.subr.mxu0 %v463
        %734 = vmatpush1.msra.mxu0 %v462
        %735 = vmatprep.subr.mxu0 %v471
        %736 = vmatpush1.msra.mxu0 %v470
        %737 = vmatprep.subr.mxu0 %v479
        %738 = vmatpush1.msra.mxu0 %v478
        %739 = vmatprep.subr.mxu0 %v487
        %740 = vmatpush1.msra.mxu0 %v486
        %741 = vmatprep.subr.mxu0 %v495
        %742 = vmatpush1.msra.mxu0 %v494
        %743 = vmatprep.subr.mxu0 %v503
        %744 = vmatpush1.msra.mxu0 %v502
        %745 = vmatprep.subr.mxu0 %v511
        %746 = vmatpush1.msra.mxu0 %v510
        %747 = vmatprep.subr.mxu0 %v519
        %748 = vmatpush1.msra.mxu0 %v518
        %749 = vmatprep.subr.mxu0 %v527
        %750 = vmatpush1.msra.mxu0 %v526
        %751 = vmatprep.subr.mxu0 %v535
        %752 = vmatpush1.msra.mxu0 %v534
        %753 = vmatprep.subr.mxu0 %v543
        %754 = vmatpush1.msra.mxu0 %v542
        %755 = vmatprep.subr.mxu0 %v551
        %756 = vmatpush1.msra.mxu0 %v550
        %757 = vmatprep.subr.mxu0 %v559
        %758 = vmatpush1.msra.mxu0 %v558
        %759 = vmatprep.subr.mxu0 %v567
        %760 = vmatpush1.msra.mxu0 %v566
        %761 = vmatprep.subr.mxu0 %v575
        %762 = vmatpush1.msra.mxu0 %v574
        %763 = vmatprep.subr.mxu0 %v583
        %764 = vmatpush1.msra.mxu0 %v582
        %765 = vmatprep.subr.mxu0 %v591
        %766 = vmatpush1.msra.mxu0 %v590
        %767 = vmatprep.subr.mxu0 %v599
        %768 = vmatpush1.msra.mxu0 %v598
        %769 = vmatprep.subr.mxu0 %v607
        %770 = vmatpush1.msra.mxu0 %v606
        %771 = vmatprep.subr.mxu0 %v615
        %772 = vmatpush1.msra.mxu0 %v614
        %773 = vmatprep.mubr.f32.mxu0 %v357
        %774 = vmatmul.mubr.f32.gmra.mrb[0].mxu0 %v356
        %v775 = vpop.f32.mrb[0].mxu0
        %v776 = vadd.f32 0.0, %v775
        %v777 = vpop.f32.mrb[0].mxu0
        %v778 = vadd.f32 0.0, %v777
        %779 = vmatprep.mubr.f32.mxu0 %v359
        %780 = vmatmul.mubr.f32.gmra.mrb[0].mxu0 %v358
        %v781 = vpop.f32.mrb[0].mxu0
        %v782 = vadd.f32 0.0, %v781
        %v783 = vpop.f32.mrb[0].mxu0
        %v784 = vadd.f32 0.0, %v783
        %785 = vmatprep.mubr.f32.mxu0 %v361
        %786 = vmatmul.mubr.f32.gmra.mrb[0].mxu0 %v360
        %v787 = vpop.f32.mrb[0].mxu0
        %v788 = vadd.f32 0.0, %v787
        %v789 = vpop.f32.mrb[0].mxu0
        %v790 = vadd.f32 0.0, %v789
        %791 = vmatprep.mubr.f32.mxu0 %v363
        %792 = vmatmul.mubr.f32.gmra.mrb[0].mxu0 %v362
        %v793 = vpop.f32.mrb[0].mxu0
        %v794 = vadd.f32 0.0, %v793
        %v795 = vpop.f32.mrb[0].mxu0
        %v796 = vadd.f32 0.0, %v795
        %797 = vdwg.mxu0
        %798 = vmatprep.subr.mxu0 %v369
        %799 = vmatpush1.msra.mxu0 %v368
        %800 = vmatprep.subr.mxu0 %v377
        %801 = vmatpush1.msra.mxu0 %v376
        %802 = vmatprep.subr.mxu0 %v385
        %803 = vmatpush1.msra.mxu0 %v384
        %804 = vmatprep.subr.mxu0 %v393
        %805 = vmatpush1.msra.mxu0 %v392
        %806 = vmatprep.subr.mxu0 %v401
        %807 = vmatpush1.msra.mxu0 %v400
        %808 = vmatprep.subr.mxu0 %v409
        %809 = vmatpush1.msra.mxu0 %v408
        %810 = vmatprep.subr.mxu0 %v417
        %811 = vmatpush1.msra.mxu0 %v416
        %812 = vmatprep.subr.mxu0 %v425
        %813 = vmatpush1.msra.mxu0 %v424
        %814 = vmatprep.subr.mxu0 %v433
        %815 = vmatpush1.msra.mxu0 %v432
        %816 = vmatprep.subr.mxu0 %v441
        %817 = vmatpush1.msra.mxu0 %v440
        %818 = vmatprep.subr.mxu0 %v449
        %819 = vmatpush1.msra.mxu0 %v448
        %820 = vmatprep.subr.mxu0 %v457
        %821 = vmatpush1.msra.mxu0 %v456
        %822 = vmatprep.subr.mxu0 %v465
        %823 = vmatpush1.msra.mxu0 %v464
        %824 = vmatprep.subr.mxu0 %v473
        %825 = vmatpush1.msra.mxu0 %v472
        %826 = vmatprep.subr.mxu0 %v481
        %827 = vmatpush1.msra.mxu0 %v480
        %828 = vmatprep.subr.mxu0 %v489
        %829 = vmatpush1.msra.mxu0 %v488
        %830 = vmatprep.subr.mxu0 %v497
        %831 = vmatpush1.msra.mxu0 %v496
        %832 = vmatprep.subr.mxu0 %v505
        %833 = vmatpush1.msra.mxu0 %v504
        %834 = vmatprep.subr.mxu0 %v513
        %835 = vmatpush1.msra.mxu0 %v512
        %836 = vmatprep.subr.mxu0 %v521
        %837 = vmatpush1.msra.mxu0 %v520
        %838 = vmatprep.subr.mxu0 %v529
        %839 = vmatpush1.msra.mxu0 %v528
        %840 = vmatprep.subr.mxu0 %v537
        %841 = vmatpush1.msra.mxu0 %v536
        %842 = vmatprep.subr.mxu0 %v545
        %843 = vmatpush1.msra.mxu0 %v544
        %844 = vmatprep.subr.mxu0 %v553
        %845 = vmatpush1.msra.mxu0 %v552
        %846 = vmatprep.subr.mxu0 %v561
        %847 = vmatpush1.msra.mxu0 %v560
        %848 = vmatprep.subr.mxu0 %v569
        %849 = vmatpush1.msra.mxu0 %v568
        %850 = vmatprep.subr.mxu0 %v577
        %851 = vmatpush1.msra.mxu0 %v576
        %852 = vmatprep.subr.mxu0 %v585
        %853 = vmatpush1.msra.mxu0 %v584
        %854 = vmatprep.subr.mxu0 %v593
        %855 = vmatpush1.msra.mxu0 %v592
        %856 = vmatprep.subr.mxu0 %v601
        %857 = vmatpush1.msra.mxu0 %v600
        %858 = vmatprep.subr.mxu0 %v609
        %859 = vmatpush1.msra.mxu0 %v608
        %860 = vmatprep.subr.mxu0 %v617
        %861 = vmatpush1.msra.mxu0 %v616
        %862 = vmatprep.mubr.f32.mxu0 %v357
        %863 = vmatmul.mubr.f32.gmra.mrb[0].mxu0 %v356
        %v864 = vpop.f32.mrb[0].mxu0
        %v865 = vadd.f32 0.0, %v864
        %v866 = vpop.f32.mrb[0].mxu0
        %v867 = vadd.f32 0.0, %v866
        %868 = vmatprep.mubr.f32.mxu0 %v359
        %869 = vmatmul.mubr.f32.gmra.mrb[0].mxu0 %v358
        %v870 = vpop.f32.mrb[0].mxu0
        %v871 = vadd.f32 0.0, %v870
        %v872 = vpop.f32.mrb[0].mxu0
        %v873 = vadd.f32 0.0, %v872
        %874 = vmatprep.mubr.f32.mxu0 %v361
        %875 = vmatmul.mubr.f32.gmra.mrb[0].mxu0 %v360
        %v876 = vpop.f32.mrb[0].mxu0
        %v877 = vadd.f32 0.0, %v876
        %v878 = vpop.f32.mrb[0].mxu0
        %v879 = vadd.f32 0.0, %v878
        %880 = vmatprep.mubr.f32.mxu0 %v363
        %881 = vmatmul.mubr.f32.gmra.mrb[0].mxu0 %v362
        %v882 = vpop.f32.mrb[0].mxu0
        %v883 = vadd.f32 0.0, %v882
        %v884 = vpop.f32.mrb[0].mxu0
        %v885 = vadd.f32 0.0, %v884
        %886 = vdwg.mxu0
        %887 = vmatprep.subr.mxu0 %v371
        %888 = vmatpush1.msra.mxu0 %v370
        %889 = vmatprep.subr.mxu0 %v379
        %890 = vmatpush1.msra.mxu0 %v378
        %891 = vmatprep.subr.mxu0 %v387
        %892 = vmatpush1.msra.mxu0 %v386
        %893 = vmatprep.subr.mxu0 %v395
        %894 = vmatpush1.msra.mxu0 %v394
        %895 = vmatprep.subr.mxu0 %v403
        %896 = vmatpush1.msra.mxu0 %v402
        %897 = vmatprep.subr.mxu0 %v411
        %898 = vmatpush1.msra.mxu0 %v410
        %899 = vmatprep.subr.mxu0 %v419
        %900 = vmatpush1.msra.mxu0 %v418
        %901 = vmatprep.subr.mxu0 %v427
        %902 = vmatpush1.msra.mxu0 %v426
        %903 = vmatprep.subr.mxu0 %v435
        %904 = vmatpush1.msra.mxu0 %v434
        %905 = vmatprep.subr.mxu0 %v443
        %906 = vmatpush1.msra.mxu0 %v442
        %907 = vmatprep.subr.mxu0 %v451
        %908 = vmatpush1.msra.mxu0 %v450
        %909 = vmatprep.subr.mxu0 %v459
        %910 = vmatpush1.msra.mxu0 %v458
        %911 = vmatprep.subr.mxu0 %v467
        %912 = vmatpush1.msra.mxu0 %v466
        %913 = vmatprep.subr.mxu0 %v475
        %914 = vmatpush1.msra.mxu0 %v474
        %915 = vmatprep.subr.mxu0 %v483
        %916 = vmatpush1.msra.mxu0 %v482
        %917 = vmatprep.subr.mxu0 %v491
        %918 = vmatpush1.msra.mxu0 %v490
        %919 = vmatprep.subr.mxu0 %v499
        %920 = vmatpush1.msra.mxu0 %v498
        %921 = vmatprep.subr.mxu0 %v507
        %922 = vmatpush1.msra.mxu0 %v506
        %923 = vmatprep.subr.mxu0 %v515
        %924 = vmatpush1.msra.mxu0 %v514
        %925 = vmatprep.subr.mxu0 %v523
        %926 = vmatpush1.msra.mxu0 %v522
        %927 = vmatprep.subr.mxu0 %v531
        %928 = vmatpush1.msra.mxu0 %v530
        %929 = vmatprep.subr.mxu0 %v539
        %930 = vmatpush1.msra.mxu0 %v538
        %931 = vmatprep.subr.mxu0 %v547
        %932 = vmatpush1.msra.mxu0 %v546
        %933 = vmatprep.subr.mxu0 %v555
        %934 = vmatpush1.msra.mxu0 %v554
        %935 = vmatprep.subr.mxu0 %v563
        %936 = vmatpush1.msra.mxu0 %v562
        %937 = vmatprep.subr.mxu0 %v571
        %938 = vmatpush1.msra.mxu0 %v570
        %939 = vmatprep.subr.mxu0 %v579
        %940 = vmatpush1.msra.mxu0 %v578
        %941 = vmatprep.subr.mxu0 %v587
        %942 = vmatpush1.msra.mxu0 %v586
        %943 = vmatprep.subr.mxu0 %v595
        %944 = vmatpush1.msra.mxu0 %v594
        %945 = vmatprep.subr.mxu0 %v603
        %946 = vmatpush1.msra.mxu0 %v602
        %947 = vmatprep.subr.mxu0 %v611
        %948 = vmatpush1.msra.mxu0 %v610
        %949 = vmatprep.subr.mxu0 %v619
        %950 = vmatpush1.msra.mxu0 %v618
        %951 = vmatprep.mubr.f32.mxu0 %v357
        %952 = vmatmul.mubr.f32.gmra.mrb[0].mxu0 %v356
        %v953 = vpop.f32.mrb[0].mxu0
        %v954 = vadd.f32 0.0, %v953
        %v955 = vpop.f32.mrb[0].mxu0
        %v956 = vadd.f32 0.0, %v955
        %957 = vmatprep.mubr.f32.mxu0 %v359
        %958 = vmatmul.mubr.f32.gmra.mrb[0].mxu0 %v358
        %v959 = vpop.f32.mrb[0].mxu0
        %v960 = vadd.f32 0.0, %v959
        %v961 = vpop.f32.mrb[0].mxu0
        %v962 = vadd.f32 0.0, %v961
        %963 = vmatprep.mubr.f32.mxu0 %v361
        %964 = vmatmul.mubr.f32.gmra.mrb[0].mxu0 %v360
        %v965 = vpop.f32.mrb[0].mxu0
        %v966 = vadd.f32 0.0, %v965
        %v967 = vpop.f32.mrb[0].mxu0
        %v968 = vadd.f32 0.0, %v967
        %969 = vmatprep.mubr.f32.mxu0 %v363
        %970 = vmatmul.mubr.f32.gmra.mrb[0].mxu0 %v362
        %v971 = vpop.f32.mrb[0].mxu0
        %v972 = vadd.f32 0.0, %v971
        %v973 = vpop.f32.mrb[0].mxu0
        %v974 = vadd.f32 0.0, %v973
        %975 = vdwg.mxu0
        %v976 = vadd.f32 %v687, %v693
        %v977 = vadd.f32 %v976, %v699
        %v978 = vadd.f32 %v977, %v705
        %v979 = vrot.slane %v978, 4
        %v980 = vadd.f32 %v978, %v979
        %v981 = vrot.slane %v980, 2
        %v982 = vadd.f32 %v980, %v981
        %v983 = vrot.slane %v982, 1
        %v984 = vadd.f32 %v982, %v983
        %v985 = vadd.f32 %v689, %v695
        %v986 = vadd.f32 %v985, %v701
        %v987 = vadd.f32 %v986, %v707
        %v988 = vrot.slane %v987, 4
        %v989 = vadd.f32 %v987, %v988
        %v990 = vrot.slane %v989, 2
        %v991 = vadd.f32 %v989, %v990
        %v992 = vrot.slane %v991, 1
        %v993 = vadd.f32 %v991, %v992
        %v994 = vadd.f32 %v776, %v782
        %v995 = vadd.f32 %v994, %v788
        %v996 = vadd.f32 %v995, %v794
        %v997 = vrot.slane %v996, 4
        %v998 = vadd.f32 %v996, %v997
        %v999 = vrot.slane %v998, 2
        %v1000 = vadd.f32 %v998, %v999
        %v1001 = vrot.slane %v1000, 1
        %v1002 = vadd.f32 %v1000, %v1001
        %v1003 = vadd.f32 %v778, %v784
        %v1004 = vadd.f32 %v1003, %v790
        %v1005 = vadd.f32 %v1004, %v796
        %v1006 = vrot.slane %v1005, 4
        %v1007 = vadd.f32 %v1005, %v1006
        %v1008 = vrot.slane %v1007, 2
        %v1009 = vadd.f32 %v1007, %v1008
        %v1010 = vrot.slane %v1009, 1
        %v1011 = vadd.f32 %v1009, %v1010
        %v1012 = vadd.f32 %v865, %v871
        %v1013 = vadd.f32 %v1012, %v877
        %v1014 = vadd.f32 %v1013, %v883
        %v1015 = vrot.slane %v1014, 4
        %v1016 = vadd.f32 %v1014, %v1015
        %v1017 = vrot.slane %v1016, 2
        %v1018 = vadd.f32 %v1016, %v1017
        %v1019 = vrot.slane %v1018, 1
        %v1020 = vadd.f32 %v1018, %v1019
        %v1021 = vadd.f32 %v867, %v873
        %v1022 = vadd.f32 %v1021, %v879
        %v1023 = vadd.f32 %v1022, %v885
        %v1024 = vrot.slane %v1023, 4
        %v1025 = vadd.f32 %v1023, %v1024
        %v1026 = vrot.slane %v1025, 2
        %v1027 = vadd.f32 %v1025, %v1026
        %v1028 = vrot.slane %v1027, 1
        %v1029 = vadd.f32 %v1027, %v1028
        %v1030 = vadd.f32 %v954, %v960
        %v1031 = vadd.f32 %v1030, %v966
        %v1032 = vadd.f32 %v1031, %v972
        %v1033 = vrot.slane %v1032, 4
        %v1034 = vadd.f32 %v1032, %v1033
        %v1035 = vrot.slane %v1034, 2
        %v1036 = vadd.f32 %v1034, %v1035
        %v1037 = vrot.slane %v1036, 1
        %v1038 = vadd.f32 %v1036, %v1037
        %v1039 = vadd.f32 %v956, %v962
        %v1040 = vadd.f32 %v1039, %v968
        %v1041 = vadd.f32 %v1040, %v974
        %v1042 = vrot.slane %v1041, 4
        %v1043 = vadd.f32 %v1041, %v1042
        %v1044 = vrot.slane %v1043, 2
        %v1045 = vadd.f32 %v1043, %v1044
        %v1046 = vrot.slane %v1045, 1
        %v1047 = vadd.f32 %v1045, %v1046
        %v1048 = vrcp.pop 32.0
        %v1049 = vmul.f32 %v984, %v1048
        %v1050 = vmul.f32 %v993, %v1048
        %v1051 = vmul.f32 %v1002, %v1048
        %v1052 = vmul.f32 %v1011, %v1048
        %v1053 = vmul.f32 %v1020, %v1048
        %v1054 = vmul.f32 %v1029, %v1048
        %v1055 = vmul.f32 %v1038, %v1048
        %v1056 = vmul.f32 %v1047, %v1048
        %v1057 = vsub.f32 %v687, %v1049
        %v1058 = vsub.f32 %v689, %v1050
        %v1059 = vsub.f32 %v776, %v1051
        %v1060 = vsub.f32 %v778, %v1052
        %v1061 = vsub.f32 %v865, %v1053
        %v1062 = vsub.f32 %v867, %v1054
        %v1063 = vsub.f32 %v954, %v1055
        %v1064 = vsub.f32 %v956, %v1056
        %v1065 = vsub.f32 %v693, %v1049
        %v1066 = vsub.f32 %v695, %v1050
        %v1067 = vsub.f32 %v782, %v1051
        %v1068 = vsub.f32 %v784, %v1052
        %v1069 = vsub.f32 %v871, %v1053
        %v1070 = vsub.f32 %v873, %v1054
        %v1071 = vsub.f32 %v960, %v1055
        %v1072 = vsub.f32 %v962, %v1056
        %v1073 = vsub.f32 %v699, %v1049
        %v1074 = vsub.f32 %v701, %v1050
        %v1075 = vsub.f32 %v788, %v1051
        %v1076 = vsub.f32 %v790, %v1052
        %v1077 = vsub.f32 %v877, %v1053
        %v1078 = vsub.f32 %v879, %v1054
        %v1079 = vsub.f32 %v966, %v1055
        %v1080 = vsub.f32 %v968, %v1056
        %v1081 = vsub.f32 %v705, %v1049
        %v1082 = vsub.f32 %v707, %v1050
        %v1083 = vsub.f32 %v794, %v1051
        %v1084 = vsub.f32 %v796, %v1052
        %v1085 = vsub.f32 %v883, %v1053
        %v1086 = vsub.f32 %v885, %v1054
        %v1087 = vsub.f32 %v972, %v1055
        %v1088 = vsub.f32 %v974, %v1056
        %v1089 = vmul.f32 %v1057, %v1057
        %v1090 = vmul.f32 %v1058, %v1058
        %v1091 = vmul.f32 %v1059, %v1059
        %v1092 = vmul.f32 %v1060, %v1060
        %v1093 = vmul.f32 %v1061, %v1061
        %v1094 = vmul.f32 %v1062, %v1062
        %v1095 = vmul.f32 %v1063, %v1063
        %v1096 = vmul.f32 %v1064, %v1064
        %v1097 = vmul.f32 %v1065, %v1065
        %v1098 = vmul.f32 %v1066, %v1066
        %v1099 = vmul.f32 %v1067, %v1067
        %v1100 = vmul.f32 %v1068, %v1068
        %v1101 = vmul.f32 %v1069, %v1069
        %v1102 = vmul.f32 %v1070, %v1070
        %v1103 = vmul.f32 %v1071, %v1071
        %v1104 = vmul.f32 %v1072, %v1072
        %v1105 = vmul.f32 %v1073, %v1073
        %v1106 = vmul.f32 %v1074, %v1074
        %v1107 = vmul.f32 %v1075, %v1075
        %v1108 = vmul.f32 %v1076, %v1076
        %v1109 = vmul.f32 %v1077, %v1077
        %v1110 = vmul.f32 %v1078, %v1078
        %v1111 = vmul.f32 %v1079, %v1079
        %v1112 = vmul.f32 %v1080, %v1080
        %v1113 = vmul.f32 %v1081, %v1081
        %v1114 = vmul.f32 %v1082, %v1082
        %v1115 = vmul.f32 %v1083, %v1083
        %v1116 = vmul.f32 %v1084, %v1084
        %v1117 = vmul.f32 %v1085, %v1085
        %v1118 = vmul.f32 %v1086, %v1086
        %v1119 = vmul.f32 %v1087, %v1087
        %v1120 = vmul.f32 %v1088, %v1088
        %v1121 = vadd.f32 %v1089, %v1097
        %v1122 = vadd.f32 %v1121, %v1105
        %v1123 = vadd.f32 %v1122, %v1113
        %v1124 = vrot.slane %v1123, 4
        %v1125 = vadd.f32 %v1123, %v1124
        %v1126 = vrot.slane %v1125, 2
        %v1127 = vadd.f32 %v1125, %v1126
        %v1128 = vrot.slane %v1127, 1
        %v1129 = vadd.f32 %v1127, %v1128
        %v1130 = vadd.f32 %v1090, %v1098
        %v1131 = vadd.f32 %v1130, %v1106
        %v1132 = vadd.f32 %v1131, %v1114
        %v1133 = vrot.slane %v1132, 4
        %v1134 = vadd.f32 %v1132, %v1133
        %v1135 = vrot.slane %v1134, 2
        %v1136 = vadd.f32 %v1134, %v1135
        %v1137 = vrot.slane %v1136, 1
        %v1138 = vadd.f32 %v1136, %v1137
        %v1139 = vadd.f32 %v1091, %v1099
        %v1140 = vadd.f32 %v1139, %v1107
        %v1141 = vadd.f32 %v1140, %v1115
        %v1142 = vrot.slane %v1141, 4
        %v1143 = vadd.f32 %v1141, %v1142
        %v1144 = vrot.slane %v1143, 2
        %v1145 = vadd.f32 %v1143, %v1144
        %v1146 = vrot.slane %v1145, 1
        %v1147 = vadd.f32 %v1145, %v1146
        %v1148 = vadd.f32 %v1092, %v1100
        %v1149 = vadd.f32 %v1148, %v1108
        %v1150 = vadd.f32 %v1149, %v1116
        %v1151 = vrot.slane %v1150, 4
        %v1152 = vadd.f32 %v1150, %v1151
        %v1153 = vrot.slane %v1152, 2
        %v1154 = vadd.f32 %v1152, %v1153
        %v1155 = vrot.slane %v1154, 1
        %v1156 = vadd.f32 %v1154, %v1155
        %v1157 = vadd.f32 %v1093, %v1101
        %v1158 = vadd.f32 %v1157, %v1109
        %v1159 = vadd.f32 %v1158, %v1117
        %v1160 = vrot.slane %v1159, 4
        %v1161 = vadd.f32 %v1159, %v1160
        %v1162 = vrot.slane %v1161, 2
        %v1163 = vadd.f32 %v1161, %v1162
        %v1164 = vrot.slane %v1163, 1
        %v1165 = vadd.f32 %v1163, %v1164
        %v1166 = vadd.f32 %v1094, %v1102
        %v1167 = vadd.f32 %v1166, %v1110
        %v1168 = vadd.f32 %v1167, %v1118
        %v1169 = vrot.slane %v1168, 4
        %v1170 = vadd.f32 %v1168, %v1169
        %v1171 = vrot.slane %v1170, 2
        %v1172 = vadd.f32 %v1170, %v1171
        %v1173 = vrot.slane %v1172, 1
        %v1174 = vadd.f32 %v1172, %v1173
        %v1175 = vadd.f32 %v1095, %v1103
        %v1176 = vadd.f32 %v1175, %v1111
        %v1177 = vadd.f32 %v1176, %v1119
        %v1178 = vrot.slane %v1177, 4
        %v1179 = vadd.f32 %v1177, %v1178
        %v1180 = vrot.slane %v1179, 2
        %v1181 = vadd.f32 %v1179, %v1180
        %v1182 = vrot.slane %v1181, 1
        %v1183 = vadd.f32 %v1181, %v1182
        %v1184 = vadd.f32 %v1096, %v1104
        %v1185 = vadd.f32 %v1184, %v1112
        %v1186 = vadd.f32 %v1185, %v1120
        %v1187 = vrot.slane %v1186, 4
        %v1188 = vadd.f32 %v1186, %v1187
        %v1189 = vrot.slane %v1188, 2
        %v1190 = vadd.f32 %v1188, %v1189
        %v1191 = vrot.slane %v1190, 1
        %v1192 = vadd.f32 %v1190, %v1191
        %v1193 = vmul.f32 %v1129, %v1048
        %v1194 = vmul.f32 %v1138, %v1048
        %v1195 = vmul.f32 %v1147, %v1048
        %v1196 = vmul.f32 %v1156, %v1048
        %v1197 = vmul.f32 %v1165, %v1048
        %v1198 = vmul.f32 %v1174, %v1048
        %v1199 = vmul.f32 %v1183, %v1048
        %v1200 = vmul.f32 %v1192, %v1048
        %v1201 = vadd.f32 %v1193, 1e-05
        %v1202 = vadd.f32 %v1194, 1e-05
        %v1203 = vadd.f32 %v1195, 1e-05
        %v1204 = vadd.f32 %v1196, 1e-05
        %v1205 = vadd.f32 %v1197, 1e-05
        %v1206 = vadd.f32 %v1198, 1e-05
        %v1207 = vadd.f32 %v1199, 1e-05
        %v1208 = vadd.f32 %v1200, 1e-05
        %v1209 = vrsqrt.pop %v1201
        %v1210 = vrsqrt.pop %v1202
        %v1211 = vrsqrt.pop %v1203
        %v1212 = vrsqrt.pop %v1204
        %v1213 = vrsqrt.pop %v1205
        %v1214 = vrsqrt.pop %v1206
        %v1215 = vrsqrt.pop %v1207
        %v1216 = vrsqrt.pop %v1208
        %v1217 = vmul.f32 %v1057, %v1209
        %v1218 = vmul.f32 %v1058, %v1210
        %v1219 = vmul.f32 %v1059, %v1211
        %v1220 = vmul.f32 %v1060, %v1212
        %v1221 = vmul.f32 %v1061, %v1213
        %v1222 = vmul.f32 %v1062, %v1214
        %v1223 = vmul.f32 %v1063, %v1215
        %v1224 = vmul.f32 %v1064, %v1216
        %v1225 = vmul.f32 %v1065, %v1209
        %v1226 = vmul.f32 %v1066, %v1210
        %v1227 = vmul.f32 %v1067, %v1211
        %v1228 = vmul.f32 %v1068, %v1212
        %v1229 = vmul.f32 %v1069, %v1213
        %v1230 = vmul.f32 %v1070, %v1214
        %v1231 = vmul.f32 %v1071, %v1215
        %v1232 = vmul.f32 %v1072, %v1216
        %v1233 = vmul.f32 %v1073, %v1209
        %v1234 = vmul.f32 %v1074, %v1210
        %v1235 = vmul.f32 %v1075, %v1211
        %v1236 = vmul.f32 %v1076, %v1212
        %v1237 = vmul.f32 %v1077, %v1213
        %v1238 = vmul.f32 %v1078, %v1214
        %v1239 = vmul.f32 %v1079, %v1215
        %v1240 = vmul.f32 %v1080, %v1216
        %v1241 = vmul.f32 %v1081, %v1209
        %v1242 = vmul.f32 %v1082, %v1210
        %v1243 = vmul.f32 %v1083, %v1211
        %v1244 = vmul.f32 %v1084, %v1212
        %v1245 = vmul.f32 %v1085, %v1213
        %v1246 = vmul.f32 %v1086, %v1214
        %v1247 = vmul.f32 %v1087, %v1215
        %v1248 = vmul.f32 %v1088, %v1216
        %v1249 = vld [vmem:[%s2] sm:$0xff]
        %v1250 = vld [vmem:[%s2 + $0x8] sm:$0xff]
        %v1251 = vld [vmem:[%s2 + $0x10] sm:$0xff]
        %v1252 = vld [vmem:[%s2 + $0x18] sm:$0xff]
        %1254 = vset.pattern.permute.xlu0 0
        %1255 = vperm.xlu0 %1254, %v1249
        %v1256 = vpop.permute.xlu0 %1255
        %1259 = vset.pattern.permute.xlu0 0
        %1260 = vperm.xlu0 %1259, %v1250
        %v1261 = vpop.permute.xlu0 %1260
        %1264 = vset.pattern.permute.xlu0 0
        %1265 = vperm.xlu0 %1264, %v1251
        %v1266 = vpop.permute.xlu0 %1265
        %1269 = vset.pattern.permute.xlu0 0
        %1270 = vperm.xlu0 %1269, %v1252
        %v1271 = vpop.permute.xlu0 %1270
        %v1273 = vmul.f32 %v1217, %v1256
        %v1274 = vmul.f32 %v1218, %v1256
        %v1275 = vmul.f32 %v1219, %v1256
        %v1276 = vmul.f32 %v1220, %v1256
        %v1277 = vmul.f32 %v1221, %v1256
        %v1278 = vmul.f32 %v1222, %v1256
        %v1279 = vmul.f32 %v1223, %v1256
        %v1280 = vmul.f32 %v1224, %v1256
        %v1281 = vmul.f32 %v1225, %v1261
        %v1282 = vmul.f32 %v1226, %v1261
        %v1283 = vmul.f32 %v1227, %v1261
        %v1284 = vmul.f32 %v1228, %v1261
        %v1285 = vmul.f32 %v1229, %v1261
        %v1286 = vmul.f32 %v1230, %v1261
        %v1287 = vmul.f32 %v1231, %v1261
        %v1288 = vmul.f32 %v1232, %v1261
        %v1289 = vmul.f32 %v1233, %v1266
        %v1290 = vmul.f32 %v1234, %v1266
        %v1291 = vmul.f32 %v1235, %v1266
        %v1292 = vmul.f32 %v1236, %v1266
        %v1293 = vmul.f32 %v1237, %v1266
        %v1294 = vmul.f32 %v1238, %v1266
        %v1295 = vmul.f32 %v1239, %v1266
        %v1296 = vmul.f32 %v1240, %v1266
        %v1297 = vmul.f32 %v1241, %v1271
        %v1298 = vmul.f32 %v1242, %v1271
        %v1299 = vmul.f32 %v1243, %v1271
        %v1300 = vmul.f32 %v1244, %v1271
        %v1301 = vmul.f32 %v1245, %v1271
        %v1302 = vmul.f32 %v1246, %v1271
        %v1303 = vmul.f32 %v1247, %v1271
        %v1304 = vmul.f32 %v1248, %v1271
        %v1305 = vld [vmem:[%s3] sm:$0xff]
        %v1306 = vld [vmem:[%s3 + $0x8] sm:$0xff]
        %v1307 = vld [vmem:[%s3 + $0x10] sm:$0xff]
        %v1308 = vld [vmem:[%s3 + $0x18] sm:$0xff]
        %1310 = vset.pattern.permute.xlu0 0
        %1311 = vperm.xlu0 %1310, %v1305
        %v1312 = vpop.permute.xlu0 %1311
        %1315 = vset.pattern.permute.xlu0 0
        %1316 = vperm.xlu0 %1315, %v1306
        %v1317 = vpop.permute.xlu0 %1316
        %1320 = vset.pattern.permute.xlu0 0
        %1321 = vperm.xlu0 %1320, %v1307
        %v1322 = vpop.permute.xlu0 %1321
        %1325 = vset.pattern.permute.xlu0 0
        %1326 = vperm.xlu0 %1325, %v1308
        %v1327 = vpop.permute.xlu0 %1326
        %v1329 = vadd.f32 %v1273, %v1312
        %v1330 = vadd.f32 %v1274, %v1312
        %v1331 = vadd.f32 %v1275, %v1312
        %v1332 = vadd.f32 %v1276, %v1312
        %v1333 = vadd.f32 %v1277, %v1312
        %v1334 = vadd.f32 %v1278, %v1312
        %v1335 = vadd.f32 %v1279, %v1312
        %v1336 = vadd.f32 %v1280, %v1312
        %v1337 = vadd.f32 %v1281, %v1317
        %v1338 = vadd.f32 %v1282, %v1317
        %v1339 = vadd.f32 %v1283, %v1317
        %v1340 = vadd.f32 %v1284, %v1317
        %v1341 = vadd.f32 %v1285, %v1317
        %v1342 = vadd.f32 %v1286, %v1317
        %v1343 = vadd.f32 %v1287, %v1317
        %v1344 = vadd.f32 %v1288, %v1317
        %v1345 = vadd.f32 %v1289, %v1322
        %v1346 = vadd.f32 %v1290, %v1322
        %v1347 = vadd.f32 %v1291, %v1322
        %v1348 = vadd.f32 %v1292, %v1322
        %v1349 = vadd.f32 %v1293, %v1322
        %v1350 = vadd.f32 %v1294, %v1322
        %v1351 = vadd.f32 %v1295, %v1322
        %v1352 = vadd.f32 %v1296, %v1322
        %v1353 = vadd.f32 %v1297, %v1327
        %v1354 = vadd.f32 %v1298, %v1327
        %v1355 = vadd.f32 %v1299, %v1327
        %v1356 = vadd.f32 %v1300, %v1327
        %v1357 = vadd.f32 %v1301, %v1327
        %v1358 = vadd.f32 %v1302, %v1327
        %v1359 = vadd.f32 %v1303, %v1327
        %v1360 = vadd.f32 %v1304, %v1327
        %v1361 = vld [vmem:[%s4] sm:$0xff]
        %v1362 = vld [vmem:[%s4 + $0x8] sm:$0xff]
        %v1363 = vld [vmem:[%s5] sm:$0xff]
        %v1364 = vld [vmem:[%s5 + $0x8] sm:$0xff]
        %1366 = vset.pattern.permute.xlu0 0
        %1367 = vperm.xlu0 %1366, %v1363
        %v1368 = vpop.permute.xlu0 %1367
        %1371 = vset.pattern.permute.xlu0 0
        %1372 = vperm.xlu0 %1371, %v1364
        %v1373 = vpop.permute.xlu0 %1372
        %vm1375 = vcmask 261120
        %v1377 = vsel %vm1375, %v1361, 0
        %v1380 = vsel %vm1375, %v1362, 0
        %1382 = vmatprep.subr.mxu0 %v1330
        %1383 = vmatpush1.msra.mxu0 %v1329
        %1384 = vmatprep.subr.mxu0 %v1338
        %1385 = vmatpush1.msra.mxu0 %v1337
        %1386 = vmatprep.subr.mxu0 %v1346
        %1387 = vmatpush1.msra.mxu0 %v1345
        %1388 = vmatprep.subr.mxu0 %v1354
        %1389 = vmatpush1.msra.mxu0 %v1353
        %1390 = vmatprep.subr.mxu0 0.0
        %1391 = vmatpush1.msra.mxu0 0.0
        %1392 = vmatprep.subr.mxu0 0.0
        %1393 = vmatpush1.msra.mxu0 0.0
        %1394 = vmatprep.subr.mxu0 0.0
        %1395 = vmatpush1.msra.mxu0 0.0
        %1396 = vmatprep.subr.mxu0 0.0
        %1397 = vmatpush1.msra.mxu0 0.0
        %1398 = vmatprep.subr.mxu0 0.0
        %1399 = vmatpush1.msra.mxu0 0.0
        %1400 = vmatprep.subr.mxu0 0.0
        %1401 = vmatpush1.msra.mxu0 0.0
        %1402 = vmatprep.subr.mxu0 0.0
        %1403 = vmatpush1.msra.mxu0 0.0
        %1404 = vmatprep.subr.mxu0 0.0
        %1405 = vmatpush1.msra.mxu0 0.0
        %1406 = vmatprep.subr.mxu0 0.0
        %1407 = vmatpush1.msra.mxu0 0.0
        %1408 = vmatprep.subr.mxu0 0.0
        %1409 = vmatpush1.msra.mxu0 0.0
        %1410 = vmatprep.subr.mxu0 0.0
        %1411 = vmatpush1.msra.mxu0 0.0
        %1412 = vmatprep.subr.mxu0 0.0
        %1413 = vmatpush1.msra.mxu0 0.0
        %1414 = vmatprep.subr.mxu0 0.0
        %1415 = vmatpush1.msra.mxu0 0.0
        %1416 = vmatprep.subr.mxu0 0.0
        %1417 = vmatpush1.msra.mxu0 0.0
        %1418 = vmatprep.subr.mxu0 0.0
        %1419 = vmatpush1.msra.mxu0 0.0
        %1420 = vmatprep.subr.mxu0 0.0
        %1421 = vmatpush1.msra.mxu0 0.0
        %1422 = vmatprep.subr.mxu0 0.0
        %1423 = vmatpush1.msra.mxu0 0.0
        %1424 = vmatprep.subr.mxu0 0.0
        %1425 = vmatpush1.msra.mxu0 0.0
        %1426 = vmatprep.subr.mxu0 0.0
        %1427 = vmatpush1.msra.mxu0 0.0
        %1428 = vmatprep.subr.mxu0 0.0
        %1429 = vmatpush1.msra.mxu0 0.0
        %1430 = vmatprep.subr.mxu0 0.0
        %1431 = vmatpush1.msra.mxu0 0.0
        %1432 = vmatprep.subr.mxu0 0.0
        %1433 = vmatpush1.msra.mxu0 0.0
        %1434 = vmatprep.subr.mxu0 0.0
        %1435 = vmatpush1.msra.mxu0 0.0
        %1436 = vmatprep.subr.mxu0 0.0
        %1437 = vmatpush1.msra.mxu0 0.0
        %1438 = vmatprep.subr.mxu0 0.0
        %1439 = vmatpush1.msra.mxu0 0.0
        %1440 = vmatprep.subr.mxu0 0.0
        %1441 = vmatpush1.msra.mxu0 0.0
        %1442 = vmatprep.subr.mxu0 0.0
        %1443 = vmatpush1.msra.mxu0 0.0
        %1444 = vmatprep.subr.mxu0 0.0
        %1445 = vmatpush1.msra.mxu0 0.0
        %1446 = vmatprep.mubr.f32.mxu0 0.0
        %1447 = vmatmul.mubr.f32.gmra.mrb[0].mxu0 %v1377
        %v1448 = vpop.f32.mrb[0].mxu0
        %v1449 = vadd.f32 %v1368, %v1448
        %v1450 = vpop.f32.mrb[0].mxu0
        %v1451 = vadd.f32 %v1368, %v1450
        %1452 = vmatprep.mubr.f32.mxu0 0.0
        %1453 = vmatmul.mubr.f32.gmra.mrb[0].mxu0 %v1380
        %v1454 = vpop.f32.mrb[0].mxu0
        %v1455 = vadd.f32 %v1373, %v1454
        %v1456 = vpop.f32.mrb[0].mxu0
        %v1457 = vadd.f32 %v1373, %v1456
        %1458 = vdwg.mxu0
        %1459 = vmatprep.subr.mxu0 %v1332
        %1460 = vmatpush1.msra.mxu0 %v1331
        %1461 = vmatprep.subr.mxu0 %v1340
        %1462 = vmatpush1.msra.mxu0 %v1339
        %1463 = vmatprep.subr.mxu0 %v1348
        %1464 = vmatpush1.msra.mxu0 %v1347
        %1465 = vmatprep.subr.mxu0 %v1356
        %1466 = vmatpush1.msra.mxu0 %v1355
        %1467 = vmatprep.subr.mxu0 0.0
        %1468 = vmatpush1.msra.mxu0 0.0
        %1469 = vmatprep.subr.mxu0 0.0
        %1470 = vmatpush1.msra.mxu0 0.0
        %1471 = vmatprep.subr.mxu0 0.0
        %1472 = vmatpush1.msra.mxu0 0.0
        %1473 = vmatprep.subr.mxu0 0.0
        %1474 = vmatpush1.msra.mxu0 0.0
        %1475 = vmatprep.subr.mxu0 0.0
        %1476 = vmatpush1.msra.mxu0 0.0
        %1477 = vmatprep.subr.mxu0 0.0
        %1478 = vmatpush1.msra.mxu0 0.0
        %1479 = vmatprep.subr.mxu0 0.0
        %1480 = vmatpush1.msra.mxu0 0.0
        %1481 = vmatprep.subr.mxu0 0.0
        %1482 = vmatpush1.msra.mxu0 0.0
        %1483 = vmatprep.subr.mxu0 0.0
        %1484 = vmatpush1.msra.mxu0 0.0
        %1485 = vmatprep.subr.mxu0 0.0
        %1486 = vmatpush1.msra.mxu0 0.0
        %1487 = vmatprep.subr.mxu0 0.0
        %1488 = vmatpush1.msra.mxu0 0.0
        %1489 = vmatprep.subr.mxu0 0.0
        %1490 = vmatpush1.msra.mxu0 0.0
        %1491 = vmatprep.subr.mxu0 0.0
        %1492 = vmatpush1.msra.mxu0 0.0
        %1493 = vmatprep.subr.mxu0 0.0
        %1494 = vmatpush1.msra.mxu0 0.0
        %1495 = vmatprep.subr.mxu0 0.0
        %1496 = vmatpush1.msra.mxu0 0.0
        %1497 = vmatprep.subr.mxu0 0.0
        %1498 = vmatpush1.msra.mxu0 0.0
        %1499 = vmatprep.subr.mxu0 0.0
        %1500 = vmatpush1.msra.mxu0 0.0
        %1501 = vmatprep.subr.mxu0 0.0
        %1502 = vmatpush1.msra.mxu0 0.0
        %1503 = vmatprep.subr.mxu0 0.0
        %1504 = vmatpush1.msra.mxu0 0.0
        %1505 = vmatprep.subr.mxu0 0.0
        %1506 = vmatpush1.msra.mxu0 0.0
        %1507 = vmatprep.subr.mxu0 0.0
        %1508 = vmatpush1.msra.mxu0 0.0
        %1509 = vmatprep.subr.mxu0 0.0
        %1510 = vmatpush1.msra.mxu0 0.0
        %1511 = vmatprep.subr.mxu0 0.0
        %1512 = vmatpush1.msra.mxu0 0.0
        %1513 = vmatprep.subr.mxu0 0.0
        %1514 = vmatpush1.msra.mxu0 0.0
        %1515 = vmatprep.subr.mxu0 0.0
        %1516 = vmatpush1.msra.mxu0 0.0
        %1517 = vmatprep.subr.mxu0 0.0
        %1518 = vmatpush1.msra.mxu0 0.0
        %1519 = vmatprep.subr.mxu0 0.0
        %1520 = vmatpush1.msra.mxu0 0.0
        %1521 = vmatprep.subr.mxu0 0.0
        %1522 = vmatpush1.msra.mxu0 0.0
        %1523 = vmatprep.mubr.f32.mxu0 0.0
        %1524 = vmatmul.mubr.f32.gmra.mrb[0].mxu0 %v1377
        %v1525 = vpop.f32.mrb[0].mxu0
        %v1526 = vadd.f32 %v1368, %v1525
        %v1527 = vpop.f32.mrb[0].mxu0
        %v1528 = vadd.f32 %v1368, %v1527
        %1529 = vmatprep.mubr.f32.mxu0 0.0
        %1530 = vmatmul.mubr.f32.gmra.mrb[0].mxu0 %v1380
        %v1531 = vpop.f32.mrb[0].mxu0
        %v1532 = vadd.f32 %v1373, %v1531
        %v1533 = vpop.f32.mrb[0].mxu0
        %v1534 = vadd.f32 %v1373, %v1533
        %1535 = vdwg.mxu0
        %1536 = vmatprep.subr.mxu0 %v1334
        %1537 = vmatpush1.msra.mxu0 %v1333
        %1538 = vmatprep.subr.mxu0 %v1342
        %1539 = vmatpush1.msra.mxu0 %v1341
        %1540 = vmatprep.subr.mxu0 %v1350
        %1541 = vmatpush1.msra.mxu0 %v1349
        %1542 = vmatprep.subr.mxu0 %v1358
        %1543 = vmatpush1.msra.mxu0 %v1357
        %1544 = vmatprep.subr.mxu0 0.0
        %1545 = vmatpush1.msra.mxu0 0.0
        %1546 = vmatprep.subr.mxu0 0.0
        %1547 = vmatpush1.msra.mxu0 0.0
        %1548 = vmatprep.subr.mxu0 0.0
        %1549 = vmatpush1.msra.mxu0 0.0
        %1550 = vmatprep.subr.mxu0 0.0
        %1551 = vmatpush1.msra.mxu0 0.0
        %1552 = vmatprep.subr.mxu0 0.0
        %1553 = vmatpush1.msra.mxu0 0.0
        %1554 = vmatprep.subr.mxu0 0.0
        %1555 = vmatpush1.msra.mxu0 0.0
        %1556 = vmatprep.subr.mxu0 0.0
        %1557 = vmatpush1.msra.mxu0 0.0
        %1558 = vmatprep.subr.mxu0 0.0
        %1559 = vmatpush1.msra.mxu0 0.0
        %1560 = vmatprep.subr.mxu0 0.0
        %1561 = vmatpush1.msra.mxu0 0.0
        %1562 = vmatprep.subr.mxu0 0.0
        %1563 = vmatpush1.msra.mxu0 0.0
        %1564 = vmatprep.subr.mxu0 0.0
        %1565 = vmatpush1.msra.mxu0 0.0
        %1566 = vmatprep.subr.mxu0 0.0
        %1567 = vmatpush1.msra.mxu0 0.0
        %1568 = vmatprep.subr.mxu0 0.0
        %1569 = vmatpush1.msra.mxu0 0.0
        %1570 = vmatprep.subr.mxu0 0.0
        %1571 = vmatpush1.msra.mxu0 0.0
        %1572 = vmatprep.subr.mxu0 0.0
        %1573 = vmatpush1.msra.mxu0 0.0
        %1574 = vmatprep.subr.mxu0 0.0
        %1575 = vmatpush1.msra.mxu0 0.0
        %1576 = vmatprep.subr.mxu0 0.0
        %1577 = vmatpush1.msra.mxu0 0.0
        %1578 = vmatprep.subr.mxu0 0.0
        %1579 = vmatpush1.msra.mxu0 0.0
        %1580 = vmatprep.subr.mxu0 0.0
        %1581 = vmatpush1.msra.mxu0 0.0
        %1582 = vmatprep.subr.mxu0 0.0
        %1583 = vmatpush1.msra.mxu0 0.0
        %1584 = vmatprep.subr.mxu0 0.0
        %1585 = vmatpush1.msra.mxu0 0.0
        %1586 = vmatprep.subr.mxu0 0.0
        %1587 = vmatpush1.msra.mxu0 0.0
        %1588 = vmatprep.subr.mxu0 0.0
        %1589 = vmatpush1.msra.mxu0 0.0
        %1590 = vmatprep.subr.mxu0 0.0
        %1591 = vmatpush1.msra.mxu0 0.0
        %1592 = vmatprep.subr.mxu0 0.0
        %1593 = vmatpush1.msra.mxu0 0.0
        %1594 = vmatprep.subr.mxu0 0.0
        %1595 = vmatpush1.msra.mxu0 0.0
        %1596 = vmatprep.subr.mxu0 0.0
        %1597 = vmatpush1.msra.mxu0 0.0
        %1598 = vmatprep.subr.mxu0 0.0
        %1599 = vmatpush1.msra.mxu0 0.0
        %1600 = vmatprep.mubr.f32.mxu0 0.0
        %1601 = vmatmul.mubr.f32.gmra.mrb[0].mxu0 %v1377
        %v1602 = vpop.f32.mrb[0].mxu0
        %v1603 = vadd.f32 %v1368, %v1602
        %v1604 = vpop.f32.mrb[0].mxu0
        %v1605 = vadd.f32 %v1368, %v1604
        %1606 = vmatprep.mubr.f32.mxu0 0.0
        %1607 = vmatmul.mubr.f32.gmra.mrb[0].mxu0 %v1380
        %v1608 = vpop.f32.mrb[0].mxu0
        %v1609 = vadd.f32 %v1373, %v1608
        %v1610 = vpop.f32.mrb[0].mxu0
        %v1611 = vadd.f32 %v1373, %v1610
        %1612 = vdwg.mxu0
        %1613 = vmatprep.subr.mxu0 %v1336
        %1614 = vmatpush1.msra.mxu0 %v1335
        %1615 = vmatprep.subr.mxu0 %v1344
        %1616 = vmatpush1.msra.mxu0 %v1343
        %1617 = vmatprep.subr.mxu0 %v1352
        %1618 = vmatpush1.msra.mxu0 %v1351
        %1619 = vmatprep.subr.mxu0 %v1360
        %1620 = vmatpush1.msra.mxu0 %v1359
        %1621 = vmatprep.subr.mxu0 0.0
        %1622 = vmatpush1.msra.mxu0 0.0
        %1623 = vmatprep.subr.mxu0 0.0
        %1624 = vmatpush1.msra.mxu0 0.0
        %1625 = vmatprep.subr.mxu0 0.0
        %1626 = vmatpush1.msra.mxu0 0.0
        %1627 = vmatprep.subr.mxu0 0.0
        %1628 = vmatpush1.msra.mxu0 0.0
        %1629 = vmatprep.subr.mxu0 0.0
        %1630 = vmatpush1.msra.mxu0 0.0
        %1631 = vmatprep.subr.mxu0 0.0
        %1632 = vmatpush1.msra.mxu0 0.0
        %1633 = vmatprep.subr.mxu0 0.0
        %1634 = vmatpush1.msra.mxu0 0.0
        %1635 = vmatprep.subr.mxu0 0.0
        %1636 = vmatpush1.msra.mxu0 0.0
        %1637 = vmatprep.subr.mxu0 0.0
        %1638 = vmatpush1.msra.mxu0 0.0
        %1639 = vmatprep.subr.mxu0 0.0
        %1640 = vmatpush1.msra.mxu0 0.0
        %1641 = vmatprep.subr.mxu0 0.0
        %1642 = vmatpush1.msra.mxu0 0.0
        %1643 = vmatprep.subr.mxu0 0.0
        %1644 = vmatpush1.msra.mxu0 0.0
        %1645 = vmatprep.subr.mxu0 0.0
        %1646 = vmatpush1.msra.mxu0 0.0
        %1647 = vmatprep.subr.mxu0 0.0
        %1648 = vmatpush1.msra.mxu0 0.0
        %1649 = vmatprep.subr.mxu0 0.0
        %1650 = vmatpush1.msra.mxu0 0.0
        %1651 = vmatprep.subr.mxu0 0.0
        %1652 = vmatpush1.msra.mxu0 0.0
        %1653 = vmatprep.subr.mxu0 0.0
        %1654 = vmatpush1.msra.mxu0 0.0
        %1655 = vmatprep.subr.mxu0 0.0
        %1656 = vmatpush1.msra.mxu0 0.0
        %1657 = vmatprep.subr.mxu0 0.0
        %1658 = vmatpush1.msra.mxu0 0.0
        %1659 = vmatprep.subr.mxu0 0.0
        %1660 = vmatpush1.msra.mxu0 0.0
        %1661 = vmatprep.subr.mxu0 0.0
        %1662 = vmatpush1.msra.mxu0 0.0
        %1663 = vmatprep.subr.mxu0 0.0
        %1664 = vmatpush1.msra.mxu0 0.0
        %1665 = vmatprep.subr.mxu0 0.0
        %1666 = vmatpush1.msra.mxu0 0.0
        %1667 = vmatprep.subr.mxu0 0.0
        %1668 = vmatpush1.msra.mxu0 0.0
        %1669 = vmatprep.subr.mxu0 0.0
        %1670 = vmatpush1.msra.mxu0 0.0
        %1671 = vmatprep.subr.mxu0 0.0
        %1672 = vmatpush1.msra.mxu0 0.0
        %1673 = vmatprep.subr.mxu0 0.0
        %1674 = vmatpush1.msra.mxu0 0.0
        %1675 = vmatprep.subr.mxu0 0.0
        %1676 = vmatpush1.msra.mxu0 0.0
        %1677 = vmatprep.mubr.f32.mxu0 0.0
        %1678 = vmatmul.mubr.f32.gmra.mrb[0].mxu0 %v1377
        %v1679 = vpop.f32.mrb[0].mxu0
        %v1680 = vadd.f32 %v1368, %v1679
        %v1681 = vpop.f32.mrb[0].mxu0
        %v1682 = vadd.f32 %v1368, %v1681
        %1683 = vmatprep.mubr.f32.mxu0 0.0
        %1684 = vmatmul.mubr.f32.gmra.mrb[0].mxu0 %v1380
        %v1685 = vpop.f32.mrb[0].mxu0
        %v1686 = vadd.f32 %v1373, %v1685
        %v1687 = vpop.f32.mrb[0].mxu0
        %v1688 = vadd.f32 %v1373, %v1687
        %1689 = vdwg.mxu0
        %s1690 = sld [smem:[#allocation2]]
        %v1691 = vld [vmem:[#allocation7] sm:$0xff]
        %v1692 = vld [vmem:[#allocation7 + $0x8] sm:$0xff]
        %v1693 = vld [vmem:[#allocation7 + $0x10] sm:$0xff]
        %v1694 = vld [vmem:[#allocation7 + $0x18] sm:$0xff]
        %v1695 = vld [vmem:[#allocation7 + $0x20] sm:$0xff]
        %v1696 = vld [vmem:[#allocation7 + $0x28] sm:$0xff]
        %v1697 = vld [vmem:[#allocation7 + $0x30] sm:$0xff]
        %v1698 = vld [vmem:[#allocation7 + $0x38] sm:$0xff]
        %v1699 = vld [vmem:[#allocation7 + $0x40] sm:$0xff]
        %v1700 = vld [vmem:[#allocation7 + $0x48] sm:$0xff]
        %v1701 = vld [vmem:[#allocation7 + $0x50] sm:$0xff]
        %v1702 = vld [vmem:[#allocation7 + $0x58] sm:$0xff]
        %v1703 = vld [vmem:[#allocation7 + $0x60] sm:$0xff]
        %v1704 = vld [vmem:[#allocation7 + $0x68] sm:$0xff]
        %v1705 = vld [vmem:[#allocation7 + $0x70] sm:$0xff]
        %v1706 = vld [vmem:[#allocation7 + $0x78] sm:$0xff]
        %v1707 = vstv %s1690
        %v1708 = vmul.f32 %v1707, %v1691
        %v1709 = vmul.f32 %v1707, %v1692
        %v1710 = vmul.f32 %v1707, %v1693
        %v1711 = vmul.f32 %v1707, %v1694
        %v1712 = vmul.f32 %v1707, %v1695
        %v1713 = vmul.f32 %v1707, %v1696
        %v1714 = vmul.f32 %v1707, %v1697
        %v1715 = vmul.f32 %v1707, %v1698
        %v1716 = vmul.f32 %v1707, %v1699
        %v1717 = vmul.f32 %v1707, %v1700
        %v1718 = vmul.f32 %v1707, %v1701
        %v1719 = vmul.f32 %v1707, %v1702
        %v1720 = vmul.f32 %v1707, %v1703
        %v1721 = vmul.f32 %v1707, %v1704
        %v1722 = vmul.f32 %v1707, %v1705
        %v1723 = vmul.f32 %v1707, %v1706
        %v1724 = vadd.f32 %v1449, %v1708
        %v1725 = vadd.f32 %v1451, %v1709
        %v1726 = vadd.f32 %v1526, %v1710
        %v1727 = vadd.f32 %v1528, %v1711
        %v1728 = vadd.f32 %v1603, %v1712
        %v1729 = vadd.f32 %v1605, %v1713
        %v1730 = vadd.f32 %v1680, %v1714
        %v1731 = vadd.f32 %v1682, %v1715
        %v1732 = vadd.f32 %v1455, %v1716
        %v1733 = vadd.f32 %v1457, %v1717
        %v1734 = vadd.f32 %v1532, %v1718
        %v1735 = vadd.f32 %v1534, %v1719
        %v1736 = vadd.f32 %v1609, %v1720
        %v1737 = vadd.f32 %v1611, %v1721
        %v1738 = vadd.f32 %v1686, %v1722
        %v1739 = vadd.f32 %v1688, %v1723
        %1740 = vst [vmem:[%s355] sm:$0xff] %v1724
        %1741 = vst [vmem:[%s355 + $0x8] sm:$0xff] %v1725
        %1742 = vst [vmem:[%s355 + $0x10] sm:$0xff] %v1726
        %1743 = vst [vmem:[%s355 + $0x18] sm:$0xff] %v1727
        %1744 = vst [vmem:[%s355 + $0x20] sm:$0xff] %v1728
        %1745 = vst [vmem:[%s355 + $0x28] sm:$0xff] %v1729
        %1746 = vst [vmem:[%s355 + $0x30] sm:$0xff] %v1730
        %1747 = vst [vmem:[%s355 + $0x38] sm:$0xff] %v1731
        %1748 = vst [vmem:[%s355 + $0x40] sm:$0xff] %v1732
        %1749 = vst [vmem:[%s355 + $0x48] sm:$0xff] %v1733
        %1750 = vst [vmem:[%s355 + $0x50] sm:$0xff] %v1734
        %1751 = vst [vmem:[%s355 + $0x58] sm:$0xff] %v1735
        %1752 = vst [vmem:[%s355 + $0x60] sm:$0xff] %v1736
        %1753 = vst [vmem:[%s355 + $0x68] sm:$0xff] %v1737
        %1754 = vst [vmem:[%s355 + $0x70] sm:$0xff] %v1738
        %1755 = vst [vmem:[%s355 + $0x78] sm:$0xff] %v1739
        %p1756 = scmp.lt.s32.totalorder %s24, 1
        %s1757 = scalar_select %p1756, %s24, 1
        %s1758 = smul.addr %s1757, 16
        %s1759 = smul.addr %s1758, 8
        %s1760 = scalar_lea.vmem %s8, %s1759
        // Predicated region
        $region65: #{bilinear_upsample_forward.1} parent=51 // pred_check
          %p1761 = pneg %p215
        $region66: #{bilinear_upsample_forward.1} parent=51 // pred_check_branch
          %1763 = sbr.rel (%p1761) target = $region68
        $region67: #{bilinear_upsample_forward.1} parent=51 // pred_region
          _
        $region68: #{bilinear_upsample_forward.1} parent=51 // pred_fallthru
          _
      $region52: #{bilinear_upsample_forward.1} parent=5 // pred_fallthru
        _
      %p1764 = scmp.le.s32.totalorder 2, %s19
      // Predicated region
      $region69: #{bilinear_upsample_forward.1} parent=5 // pred_check
        %p1765 = pneg %p1764
      $region70: #{bilinear_upsample_forward.1} parent=5 // pred_check_branch
        %1767 = sbr.rel (%p1765) target = $region72
      $region71: #{bilinear_upsample_forward.1} parent=5 // pred_region
        %s1768 = ssub.s32 %s19, 2
        // Predicated region
        $region73: #{bilinear_upsample_forward.1} parent=71 // pred_check
          %p1769 = pneg %p221
        $region74: #{bilinear_upsample_forward.1} parent=71 // pred_check_branch
          %1771 = sbr.rel (%p1769) target = $region76
        $region75: #{bilinear_upsample_forward.1} parent=71 // pred_region
          %p1772 = scmp.lt.s32.totalorder %s25, 1
          %s1773 = scalar_select %p1772, %s25, 1
          %s1774 = smul.addr %s1773, 16
          %s1775 = smul.addr %s1774, 8
          %s1776 = scalar_lea.vmem %s8, %s1775
        $region76: #{bilinear_upsample_forward.1} parent=71 // pred_fallthru
          _
      $region72: #{bilinear_upsample_forward.1} parent=5 // pred_fallthru
        _
    $region6: #{bilinear_upsample_forward.1} parent=1 // loop_footer
      %s23 = sadd.s32 1, %s19
    $region7: #{bilinear_upsample_forward.1} parent=1 // loop_footer_branch
      %18 = sbr.rel target = $region3
    $region8: #{bilinear_upsample_forward.1} parent=1 // loop_exit
      _
    %1777 = vsyncpa [#allocation4], 1
    %s1778 = scalar_lea.sflag [#allocation4], 1
    %1779 = vsyncpa %s1778, 1
    %1780 = vsyncpa [#allocation6], 1

</llo_original>
